<compile_context>
chip_gen: v6e
topology: v6e:2x2x1
jax: 0.10.0
libtpu: 0.0.40
codegen_flags: <defaults>
</compile_context>

<pallas_src>
import functools

import jax
import jax.numpy as jnp
from jax.experimental import pallas as pl
from jax.experimental.pallas import tpu as pltpu


# ----------------------------------------------------------------------------- helpers
def _round_up(v, m):
    return ((v + m - 1) // m) * m


def _pad2(m, rows, cols):
    return jnp.pad(m, ((0, rows - m.shape[0]), (0, cols - m.shape[1])))


def _physical_vmem_bytes():
    try:
        return int(pltpu.get_tpu_info().vmem_capacity_bytes)
    except Exception:
        return 64 * 1024 * 1024  # conservative: assume v7x (smallest per-TC VMEM)


def _vmem_limit_bytes(*buffer_bytes):
    """Explicit scoped-VMEM limit only when the double-buffered working set would not
    fit the smallest per-generation default scoped limit.  Capped at 75% of the
    physical VMEM (48 MiB on v7x, 96 MiB on v5e/v6e) to leave Mosaic scratch headroom."""
    need = sum(buffer_bytes)
    if need <= 12 * 1024 * 1024:
        return None
    cap = int(0.75 * _physical_vmem_bytes())
    return int(min(need * 1.25 + (2 << 20), cap))


# ----------------------------------------------------------------------------- kernels
def _project_kernel(x_ref, w_ref, b_ref, xl_ref, xr_ref, *, f):
    """Fused per row-block projection: one wide MXU pass, then lane-aligned split.

    y = X @ [Wl^T | Wr^T] + [0 | b]  ->  xl = y[:, :f],  xr = y[:, f:] (bias folded)."""
    y = jnp.dot(x_ref[...], w_ref[...], preferred_element_type=jnp.float32)
    y = y + b_ref[...]
    xl_ref[...] = y[:, :f].astype(xl_ref.dtype)
    xr_ref[...] = y[:, f:].astype(xr_ref.dtype)


def _aggregate_kernel(a_ref, xl_ref, dinv_ref, xr_ref, o_ref, acc_ref,
                      *, activation, n_valid_cols, tile_k, xl_resident):
    """out[i] = act( (1/deg_i) * sum_k A[i,k] @ xl[k] + xr[i] )  (bias already in xr)."""
    k = pl.program_id(1)

    @pl.when(k == 0)
    def _():
        acc_ref[...] = jnp.zeros_like(acc_ref)

    if xl_resident:
        # xl is fully VMEM-resident (constant-index block); slice the k-th band.
        off = pl.multiple_of(k * tile_k, tile_k)
        xl_blk = xl_ref[pl.ds(off, tile_k), :]
    else:
        xl_blk = xl_ref[...]

    acc_ref[...] += jnp.dot(a_ref[...], xl_blk, preferred_element_type=jnp.float32)

    @pl.when(k == pl.num_programs(1) - 1)
    def _():
        z = acc_ref[...] * dinv_ref[...] + xr_ref[...].astype(jnp.float32)
        if activation == "relu":
            o_ref[...] = jnp.maximum(z, 0.0).astype(o_ref.dtype)
        else:  # masked log_softmax over the first n_valid_cols lanes (rest is padding)
            if n_valid_cols < z.shape[-1]:
                col = jax.lax.broadcasted_iota(jnp.int32, z.shape, 1)
                z = jnp.where(col < n_valid_cols, z, -1e30)
            m = jnp.max(z, axis=-1, keepdims=True)
            e = jnp.exp(z - m)
            lse = jnp.log(jnp.sum(e, axis=-1, keepdims=True)) + m
            o_ref[...] = (z - lse).astype(o_ref.dtype)


# ----------------------------------------------------------------------------- wrappers
def _project(x, w_fused, b_fused, tile_m, out_dtype):
    n_pad, din_p = x.shape
    two_f = w_fused.shape[1]
    f = two_f // 2
    x_b = jnp.dtype(x.dtype).itemsize
    w_b = jnp.dtype(w_fused.dtype).itemsize
    o_b = jnp.dtype(out_dtype).itemsize
    vmem_limit = _vmem_limit_bytes(
        2 * tile_m * din_p * x_b,      # input row blocks (double-buffered)
        2 * din_p * two_f * w_b,       # fused weights (constant-index, double-buffered)
        2 * two_f * 4,                 # fused bias row
        2 * 2 * tile_m * f * o_b,      # xl + xr output blocks
        tile_m * two_f * 4,            # in-kernel f32 matmul result
    )
    kernel = functools.partial(_project_kernel, f=f)
    return pl.pallas_call(
        kernel,
        out_shape=(jax.ShapeDtypeStruct((n_pad, f), out_dtype),
                   jax.ShapeDtypeStruct((n_pad, f), out_dtype)),
        grid_spec=pltpu.PrefetchScalarGridSpec(
            num_scalar_prefetch=0,
            grid=(n_pad // tile_m,),
            in_specs=[pl.BlockSpec((tile_m, din_p), lambda i: (i, 0)),
                      pl.BlockSpec((din_p, two_f), lambda i: (0, 0)),
                      pl.BlockSpec((1, two_f), lambda i: (0, 0))],
            out_specs=(pl.BlockSpec((tile_m, f), lambda i: (i, 0)),
                       pl.BlockSpec((tile_m, f), lambda i: (i, 0))),
        ),
        compiler_params=pltpu.CompilerParams(
            dimension_semantics=("parallel",),
            vmem_limit_bytes=vmem_limit),
    )(x, w_fused, b_fused)


def _aggregate(a, xl, deg_inv, xr, tile_i, tile_k, *, activation, out_dtype,
               n_valid_cols, xl_resident):
    n_pad = a.shape[0]
    f = xl.shape[1]
    a_b = jnp.dtype(a.dtype).itemsize
    xl_b = jnp.dtype(xl.dtype).itemsize
    xr_b = jnp.dtype(xr.dtype).itemsize
    xl_bytes = (2 * n_pad * f * xl_b) if xl_resident else (2 * tile_k * f * xl_b)
    vmem_limit = _vmem_limit_bytes(
        2 * tile_i * tile_k * a_b,                        # A blocks (double-buffered)
        xl_bytes,                                         # projected neighbour features
        2 * tile_i * 128 * 4,                             # deg_inv (lane-padded) blocks
        2 * tile_i * f * xr_b,                            # self-term blocks
        2 * tile_i * f * jnp.dtype(out_dtype).itemsize,   # output blocks
        tile_i * f * 4,                                   # f32 accumulator scratch
    )
    if xl_resident:
        xl_spec = pl.BlockSpec((n_pad, f), lambda i, k: (0, 0))   # DMA'd once
    else:
        xl_spec = pl.BlockSpec((tile_k, f), lambda i, k: (k, 0))  # streamed per k tile
    kernel = functools.partial(_aggregate_kernel, activation=activation,
                               n_valid_cols=n_valid_cols, tile_k=tile_k,
                               xl_resident=xl_resident)
    return pl.pallas_call(
        kernel,
        out_shape=jax.ShapeDtypeStruct((n_pad, f), out_dtype),
        grid_spec=pltpu.PrefetchScalarGridSpec(
            num_scalar_prefetch=0,
            grid=(n_pad // tile_i, n_pad // tile_k),
            in_specs=[pl.BlockSpec((tile_i, tile_k), lambda i, k: (i, k)),
                      xl_spec,
                      pl.BlockSpec((tile_i, 1), lambda i, k: (i, 0)),
                      pl.BlockSpec((tile_i, f), lambda i, k: (i, 0))],
            out_specs=pl.BlockSpec((tile_i, f), lambda i, k: (i, 0)),
            scratch_shapes=[pltpu.VMEM((tile_i, f), jnp.float32)],
        ),
        compiler_params=pltpu.CompilerParams(
            dimension_semantics=("parallel", "arbitrary"),
            vmem_limit_bytes=vmem_limit),
    )(a, xl, deg_inv, xr)


def graphsage_forward(x, edge_index, params, *, use_bf16=True,
                      tile_rows=512, tile_k=512, tile_proj=256,
                      xl_resident_max_bytes=8 * 1024 * 1024):
    """x: (N, dim_in) f32; edge_index: (2, E) int32 (row 0 = src, row 1 = dst)."""
    n, din = x.shape
    dh = params["w1_l"].shape[0]
    dout = params["w2_l"].shape[0]
    cd = jnp.bfloat16 if use_bf16 else jnp.float32

    for t in (tile_rows, tile_k, tile_proj):
        assert t >= 128 and (t & (t - 1)) == 0, "tiles must be powers of two >= 128"

    din_p = _round_up(din, 128)
    dh_p = _round_up(dh, 128)
    dout_p = _round_up(dout, 128)
    # All tiles are powers of two, so padding N to the largest tile makes every tile
    # divide n_pad exactly.
    n_pad = _round_up(n, max(tile_rows, tile_k, tile_proj))

    src, dst = edge_index[0], edge_index[1]
    e = src.shape[0]
    # In-degrees straight from the edge list (no N^2 row-sum pass); duplicate edges
    # counted, isolated nodes -> deg_inv = 1 (their aggregate is 0 anyway).
    deg = jnp.zeros((n_pad,), jnp.float32).at[dst].add(1.0)
    deg_inv = (1.0 / jnp.maximum(deg, 1.0)).reshape(n_pad, 1)
    # Single dense padded adjacency built directly in the compute dtype (counts are
    # small integers -> exact in bf16 up to 256 duplicates per edge).
    a_c = jnp.zeros((n_pad, n_pad), cd).at[dst, src].add(jnp.ones((e,), cd))

    x_p = _pad2(x, n_pad, din_p).astype(cd)

    # Fused weights [Wl^T | Wr^T] and fused bias [0 | b] (bias lives on lin_l in PyG,
    # and here it is folded into the self-term xr at projection time).
    w1 = jnp.concatenate([_pad2(params["w1_l"].T, din_p, dh_p),
                          _pad2(params["w1_r"].T, din_p, dh_p)], axis=1).astype(cd)
    b1 = jnp.concatenate([jnp.zeros((1, dh_p), jnp.float32),
                          _pad2(params["b1"].reshape(1, -1), 1, dh_p)], axis=1)
    w2 = jnp.concatenate([_pad2(params["w2_l"].T, dh_p, dout_p),
                          _pad2(params["w2_r"].T, dh_p, dout_p)], axis=1).astype(cd)
    b2 = jnp.concatenate([jnp.zeros((1, dout_p), jnp.float32),
                          _pad2(params["b2"].reshape(1, -1), 1, dout_p)], axis=1)

    cd_bytes = jnp.dtype(cd).itemsize

    # ---- SAGEConv layer 1 ----
    xl1, xr1 = _project(x_p, w1, b1, tile_proj, cd)
    resident1 = (2 * n_pad * dh_p * cd_bytes) <= xl_resident_max_bytes
    h = _aggregate(a_c, xl1, deg_inv, xr1, tile_rows, tile_k,
                   activation="relu", out_dtype=cd, n_valid_cols=dh_p,
                   xl_resident=resident1)
    # dropout(p=0.5) in eval mode is the identity.

    # ---- SAGEConv layer 2 + log_softmax ----
    hl, hr = _project(h, w2, b2, tile_proj, cd)
    resident2 = (2 * n_pad * dout_p * cd_bytes) <= xl_resident_max_bytes
    z = _aggregate(a_c, hl, deg_inv, hr, tile_rows, tile_k,
                   activation="log_softmax", out_dtype=jnp.float32,
                   n_valid_cols=dout, xl_resident=resident2)
    return z[:n, :dout]


# ----------------------------------------------------------------------------- reference
def _reference_forward(x, edge_index, params, compute_dtype=jnp.float32):
    """Pure-JAX reference mirroring PyG SAGEConv math (mean aggr, bias on lin_l only),
    with intermediates rounded to the compute dtype exactly like the kernel path."""
    n = x.shape[0]
    src, dst = edge_index[0], edge_index[1]
    a = jnp.zeros((n, n), jnp.float32).at[dst, src].add(1.0)
    deg = jnp.zeros((n,), jnp.float32).at[dst].add(1.0)
    deg_inv = (1.0 / jnp.maximum(deg, 1.0)).reshape(n, 1)

    cd = compute_dtype
    a_c, x_c = a.astype(cd), x.astype(cd)

    def mm(p, q):
        return jnp.dot(p, q, preferred_element_type=jnp.float32)

    xl = mm(x_c, params["w1_l"].T.astype(cd)).astype(cd)
    xr = (mm(x_c, params["w1_r"].T.astype(cd)) + params["b1"]).astype(cd)
    h = jax.nn.relu(deg_inv * mm(a_c, xl) + xr.astype(jnp.float32)).astype(cd)
    # dropout(p=0.5) in eval mode is the identity.
    hl = mm(h, params["w2_l"].T.astype(cd)).astype(cd)
    hr = (mm(h, params["w2_r"].T.astype(cd)) + params["b2"]).astype(cd)
    z = deg_inv * mm(a_c, hl) + hr.astype(jnp.float32)
    return jax.nn.log_softmax(z, axis=1)


def init_params(key, dim_in, dim_h, dim_out):
    k1, k2, k3, k4, k5, k6 = jax.random.split(key, 6)

    def glorot(k, shape):
        fan_out, fan_in = shape
        lim = (6.0 / (fan_in + fan_out)) ** 0.5
        return jax.random.uniform(k, shape, jnp.float32, -lim, lim)

    return {
        "w1_l": glorot(k1, (dim_h, dim_in)),   # lin_l weight (carries the bias)
        "w1_r": glorot(k2, (dim_h, dim_in)),   # lin_r weight (no bias)
        "b1": 0.1 * jax.random.normal(k5, (dim_h,), jnp.float32),
        "w2_l": glorot(k3, (dim_out, dim_h)),
        "w2_r": glorot(k4, (dim_out, dim_h)),
        "b2": 0.1 * jax.random.normal(k6, (dim_out,), jnp.float32),
    }


if __name__ == "__main__":
    N, DIM_IN, DIM_H, DIM_OUT = 200, 96, 48, 8
    key = jax.random.PRNGKey(0)
    k_x, k_e, k_p = jax.random.split(key, 3)

    x = jax.random.normal(k_x, (N, DIM_IN), jnp.float32)

    # Deterministic small graph: directed ring + random extra edges (duplicates allowed).
    ring_src = jnp.arange(N, dtype=jnp.int32)
    ring_dst = (ring_src + 1) % N
    extra = jax.random.randint(k_e, (2, 3 * N), 0, N, dtype=jnp.int32)
    edge_index = jnp.concatenate([jnp.stack([ring_src, ring_dst]), extra], axis=1)

    params = init_params(k_p, DIM_IN, DIM_H, DIM_OUT)

    fwd = jax.jit(graphsage_forward,
                  static_argnames=("use_bf16", "tile_rows", "tile_k", "tile_proj",
                                   "xl_resident_max_bytes"))

    # f32 path, streamed-xl aggregation: exact eval-mode semantics of the PyTorch module.
    out_f32 = jax.block_until_ready(
        fwd(x, edge_index, params, use_bf16=False,
            tile_rows=128, tile_k=128, tile_proj=128, xl_resident_max_bytes=0))
    ref_f32 = _reference_forward(x, edge_index, params, jnp.float32)
    assert out_f32.shape == (N, DIM_OUT)
    assert jnp.allclose(out_f32, ref_f32, atol=1e-4, rtol=1e-4), "f32 mismatch"

    # bf16 fast path (f32 accumulation) with default decoupled tiles + resident xl;
    # compared against a matched-precision reference.
    out_bf16 = jax.block_until_ready(fwd(x, edge_index, params, use_bf16=True))
    ref_bf16 = _reference_forward(x, edge_index, params, jnp.bfloat16)
    assert out_bf16.shape == (N, DIM_OUT)
    assert jnp.allclose(out_bf16, ref_bf16, atol=2e-2, rtol=2e-2), "bf16 mismatch"

    print("KERNEL_OK")
</pallas_src>

<mosaic_0001>
module attributes {stable_mosaic.version = 11 : i64} {
  func.func private @main(%arg0: i32) attributes {dimension_semantics = [#tpu.dimension_semantics<core_parallel>], iteration_bounds = array<i64: 2>, tpu.core_type = #tpu.core_type<sc_scalar_subcore>, window_params = []} {
    return
  }
}

module attributes {stable_mosaic.version = 11 : i64} {
  func.func private @main(%arg0: i32) attributes {dimension_semantics = [#tpu.dimension_semantics<core_parallel>], iteration_bounds = array<i64: 2>, tpu.core_type = #tpu.core_type<sc_scalar_subcore>, window_params = []} {
    return
  }
}

module attributes {stable_mosaic.version = 11 : i64} {
  func.func @_project_kernel(%arg0: i32, %arg1: memref<128x128xf32, #tpu.memory_space<vmem>>, %arg2: memref<128x256xf32, #tpu.memory_space<vmem>>, %arg3: memref<1x256xf32, #tpu.memory_space<vmem>>, %arg4: memref<128x128xf32, #tpu.memory_space<vmem>>, %arg5: memref<128x128xf32, #tpu.memory_space<vmem>>) attributes {dimension_semantics = [#tpu.dimension_semantics<parallel>], iteration_bounds = array<i64: 2>, scalar_prefetch = 0 : i64, scratch_operands = 0 : i64, tpu.core_type = #tpu.core_type<tc>, window_params = [{transform_indices = @transform_0, window_bounds = array<i64: 128, 128>}, {pipeline_mode = #tpu.pipeline_mode<synchronous>, transform_indices = @transform_1, window_bounds = array<i64: 128, 256>}, {pipeline_mode = #tpu.pipeline_mode<synchronous>, transform_indices = @transform_2, window_bounds = array<i64: 1, 256>}, {transform_indices = @transform_3, window_bounds = array<i64: 128, 128>}, {transform_indices = @transform_4, window_bounds = array<i64: 128, 128>}]} {
    %c0 = arith.constant 0 : index
    %c0_0 = arith.constant 0 : index
    %0 = vector.load %arg1[%c0, %c0_0] : memref<128x128xf32, #tpu.memory_space<vmem>>, vector<128x128xf32>
    %c0_1 = arith.constant 0 : index
    %c0_2 = arith.constant 0 : index
    %1 = vector.load %arg2[%c0_1, %c0_2] : memref<128x256xf32, #tpu.memory_space<vmem>>, vector<128x256xf32>
    %cst = arith.constant dense<0.000000e+00> : vector<128x256xf32>
    %2 = tpu.matmul %0, %1, %cst {dimension_numbers = #tpu.dot_dimension_numbers<[1], [0], [0], [1], [0, 0, 1, 1], [], []>} : vector<128x128xf32>, vector<128x256xf32>, vector<128x256xf32> -> vector<128x256xf32>
    %c0_3 = arith.constant 0 : index
    %c0_4 = arith.constant 0 : index
    %3 = vector.load %arg3[%c0_3, %c0_4] : memref<1x256xf32, #tpu.memory_space<vmem>>, vector<1x256xf32>
    %4 = vector.broadcast %3 : vector<1x256xf32> to vector<128x256xf32>
    %5 = arith.addf %2, %4 : vector<128x256xf32>
    %6 = vector.extract_strided_slice %5 {offsets = [0, 0], sizes = [128, 128], strides = [1, 1]} : vector<128x256xf32> to vector<128x128xf32>
    %c0_5 = arith.constant 0 : index
    %c0_6 = arith.constant 0 : index
    %7 = vector.load %arg4[%c0_5, %c0_6] : memref<128x128xf32, #tpu.memory_space<vmem>>, vector<128x128xf32>
    tpu.vector_store %arg4[%c0_5, %c0_6], %6 {strides = array<i32>} : memref<128x128xf32, #tpu.memory_space<vmem>>, vector<128x128xf32>,
    %8 = vector.extract_strided_slice %5 {offsets = [0, 128], sizes = [128, 128], strides = [1, 1]} : vector<128x256xf32> to vector<128x128xf32>
    %c0_7 = arith.constant 0 : index
    %c0_8 = arith.constant 0 : index
    %9 = vector.load %arg5[%c0_7, %c0_8] : memref<128x128xf32, #tpu.memory_space<vmem>>, vector<128x128xf32>
    tpu.vector_store %arg5[%c0_7, %c0_8], %8 {strides = array<i32>} : memref<128x128xf32, #tpu.memory_space<vmem>>, vector<128x128xf32>,
    return
  }
  func.func @transform_0(%arg0: i32) -> (i32, i32) {
    %c0_i32 = arith.constant 0 : i32
    %c0_i32_0 = arith.constant 0 : i32
    return %arg0, %c0_i32 : i32, i32
  }
  func.func @transform_1(%arg0: i32) -> (i32, i32) {
    %c0_i32 = arith.constant 0 : i32
    %c0_i32_0 = arith.constant 0 : i32
    %c0_i32_1 = arith.constant 0 : i32
    return %c0_i32, %c0_i32_0 : i32, i32
  }
  func.func @transform_2(%arg0: i32) -> (i32, i32) {
    %c0_i32 = arith.constant 0 : i32
    %c0_i32_0 = arith.constant 0 : i32
    %c0_i32_1 = arith.constant 0 : i32
    return %c0_i32, %c0_i32_0 : i32, i32
  }
  func.func @transform_3(%arg0: i32) -> (i32, i32) {
    %c0_i32 = arith.constant 0 : i32
    %c0_i32_0 = arith.constant 0 : i32
    return %arg0, %c0_i32 : i32, i32
  }
  func.func @transform_4(%arg0: i32) -> (i32, i32) {
    %c0_i32 = arith.constant 0 : i32
    %c0_i32_0 = arith.constant 0 : i32
    return %arg0, %c0_i32 : i32, i32
  }
}

module attributes {stable_mosaic.version = 11 : i64} {
  func.func @_aggregate_kernel(%arg0: i32, %arg1: i32, %arg2: memref<128x128xf32, #tpu.memory_space<vmem>>, %arg3: memref<128x128xf32, #tpu.memory_space<vmem>>, %arg4: memref<128x1xf32, #tpu.memory_space<vmem>>, %arg5: memref<128x128xf32, #tpu.memory_space<vmem>>, %arg6: memref<128x128xf32, #tpu.memory_space<vmem>>, %arg7: memref<128x128xf32, #tpu.memory_space<vmem>>) attributes {dimension_semantics = [#tpu.dimension_semantics<parallel>, #tpu.dimension_semantics<arbitrary>], iteration_bounds = array<i64: 2, 2>, scalar_prefetch = 0 : i64, scratch_operands = 1 : i64, tpu.core_type = #tpu.core_type<tc>, window_params = [{transform_indices = @transform_0, window_bounds = array<i64: 128, 128>}, {transform_indices = @transform_1, window_bounds = array<i64: 128, 128>}, {transform_indices = @transform_2, window_bounds = array<i64: 128, 1>}, {transform_indices = @transform_3, window_bounds = array<i64: 128, 128>}, {transform_indices = @transform_4, window_bounds = array<i64: 128, 128>}]} {
    %c0_i32 = arith.constant 0 : i32
    %0 = arith.cmpi eq, %arg1, %c0_i32 : i32
    %1 = arith.extui %0 : i1 to i32
    %c0_i32_0 = arith.constant 0 : i32
    %2 = arith.cmpi ne, %1, %c0_i32_0 : i32
    scf.if %2 {
      %cst_9 = arith.constant 0.000000e+00 : f32
      %12 = vector.broadcast %cst_9 : f32 to vector<128x128xf32>
      %c0_10 = arith.constant 0 : index
      %c0_11 = arith.constant 0 : index
      %13 = vector.load %arg7[%c0_10, %c0_11] : memref<128x128xf32, #tpu.memory_space<vmem>>, vector<128x128xf32>
      tpu.vector_store %arg7[%c0_10, %c0_11], %12 {strides = array<i32>} : memref<128x128xf32, #tpu.memory_space<vmem>>, vector<128x128xf32>,
    } else {
    }
    %c0 = arith.constant 0 : index
    %c0_1 = arith.constant 0 : index
    %3 = vector.load %arg3[%c0, %c0_1] : memref<128x128xf32, #tpu.memory_space<vmem>>, vector<128x128xf32>
    %c0_2 = arith.constant 0 : index
    %c0_3 = arith.constant 0 : index
    %4 = vector.load %arg7[%c0_2, %c0_3] : memref<128x128xf32, #tpu.memory_space<vmem>>, vector<128x128xf32>
    %c0_4 = arith.constant 0 : index
    %c0_5 = arith.constant 0 : index
    %5 = vector.load %arg2[%c0_4, %c0_5] : memref<128x128xf32, #tpu.memory_space<vmem>>, vector<128x128xf32>
    %cst = arith.constant dense<0.000000e+00> : vector<128x128xf32>
    %6 = tpu.matmul %5, %3, %cst {dimension_numbers = #tpu.dot_dimension_numbers<[1], [0], [0], [1], [0, 0, 1, 1], [], []>} : vector<128x128xf32>, vector<128x128xf32>, vector<128x128xf32> -> vector<128x128xf32>
    %7 = arith.addf %4, %6 : vector<128x128xf32>
    %c0_6 = arith.constant 0 : index
    %c0_7 = arith.constant 0 : index
    %8 = vector.load %arg7[%c0_6, %c0_7] : memref<128x128xf32, #tpu.memory_space<vmem>>, vector<128x128xf32>
    tpu.vector_store %arg7[%c0_6, %c0_7], %7 {strides = array<i32>} : memref<128x128xf32, #tpu.memory_space<vmem>>, vector<128x128xf32>,
    %c1_i32 = arith.constant 1 : i32
    %9 = arith.cmpi eq, %arg1, %c1_i32 : i32
    %10 = arith.extui %9 : i1 to i32
    %c0_i32_8 = arith.constant 0 : i32
    %11 = arith.cmpi ne, %10, %c0_i32_8 : i32
    scf.if %11 {
      %c0_9 = arith.constant 0 : index
      %c0_10 = arith.constant 0 : index
      %12 = vector.load %arg7[%c0_9, %c0_10] : memref<128x128xf32, #tpu.memory_space<vmem>>, vector<128x128xf32>
      %c0_11 = arith.constant 0 : index
      %c0_12 = arith.constant 0 : index
      %13 = vector.load %arg4[%c0_11, %c0_12] : memref<128x1xf32, #tpu.memory_space<vmem>>, vector<128x1xf32>
      %14 = vector.broadcast %13 : vector<128x1xf32> to vector<128x128xf32>
      %15 = arith.mulf %12, %14 : vector<128x128xf32>
      %c0_13 = arith.constant 0 : index
      %c0_14 = arith.constant 0 : index
      %16 = vector.load %arg5[%c0_13, %c0_14] : memref<128x128xf32, #tpu.memory_space<vmem>>, vector<128x128xf32>
      %17 = arith.addf %15, %16 : vector<128x128xf32>
      %cst_15 = arith.constant 0.000000e+00 : f32
      %18 = vector.broadcast %cst_15 : f32 to vector<128x128xf32>
      %19 = arith.maximumf %17, %18 : vector<128x128xf32>
      %c0_16 = arith.constant 0 : index
      %c0_17 = arith.constant 0 : index
      %20 = vector.load %arg6[%c0_16, %c0_17] : memref<128x128xf32, #tpu.memory_space<vmem>>, vector<128x128xf32>
      tpu.vector_store %arg6[%c0_16, %c0_17], %19 {strides = array<i32>} : memref<128x128xf32, #tpu.memory_space<vmem>>, vector<128x128xf32>,
    } else {
    }
    return
  }
  func.func @transform_0(%arg0: i32, %arg1: i32) -> (i32, i32) {
    %c0_i32 = arith.constant 0 : i32
    return %arg0, %arg1 : i32, i32
  }
  func.func @transform_1(%arg0: i32, %arg1: i32) -> (i32, i32) {
    %c0_i32 = arith.constant 0 : i32
    %c0_i32_0 = arith.constant 0 : i32
    return %arg1, %c0_i32 : i32, i32
  }
  func.func @transform_2(%arg0: i32, %arg1: i32) -> (i32, i32) {
    %c0_i32 = arith.constant 0 : i32
    %c0_i32_0 = arith.constant 0 : i32
    return %arg0, %c0_i32 : i32, i32
  }
  func.func @transform_3(%arg0: i32, %arg1: i32) -> (i32, i32) {
    %c0_i32 = arith.constant 0 : i32
    %c0_i32_0 = arith.constant 0 : i32
    return %arg0, %c0_i32 : i32, i32
  }
  func.func @transform_4(%arg0: i32, %arg1: i32) -> (i32, i32) {
    %c0_i32 = arith.constant 0 : i32
    %c0_i32_0 = arith.constant 0 : i32
    return %arg0, %c0_i32 : i32, i32
  }
}

module attributes {stable_mosaic.version = 11 : i64} {
  func.func @_aggregate_kernel(%arg0: i32, %arg1: i32, %arg2: memref<128x128xf32, #tpu.memory_space<vmem>>, %arg3: memref<128x128xf32, #tpu.memory_space<vmem>>, %arg4: memref<128x1xf32, #tpu.memory_space<vmem>>, %arg5: memref<128x128xf32, #tpu.memory_space<vmem>>, %arg6: memref<128x128xf32, #tpu.memory_space<vmem>>, %arg7: memref<128x128xf32, #tpu.memory_space<vmem>>) attributes {dimension_semantics = [#tpu.dimension_semantics<parallel>, #tpu.dimension_semantics<arbitrary>], iteration_bounds = array<i64: 2, 2>, scalar_prefetch = 0 : i64, scratch_operands = 1 : i64, tpu.core_type = #tpu.core_type<tc>, window_params = [{transform_indices = @transform_0, window_bounds = array<i64: 128, 128>}, {transform_indices = @transform_1, window_bounds = array<i64: 128, 128>}, {transform_indices = @transform_2, window_bounds = array<i64: 128, 1>}, {transform_indices = @transform_3, window_bounds = array<i64: 128, 128>}, {transform_indices = @transform_4, window_bounds = array<i64: 128, 128>}]} {
    %c0_i32 = arith.constant 0 : i32
    %0 = arith.cmpi eq, %arg1, %c0_i32 : i32
    %1 = arith.extui %0 : i1 to i32
    %c0_i32_0 = arith.constant 0 : i32
    %2 = arith.cmpi ne, %1, %c0_i32_0 : i32
    scf.if %2 {
      %cst_9 = arith.constant 0.000000e+00 : f32
      %12 = vector.broadcast %cst_9 : f32 to vector<128x128xf32>
      %c0_10 = arith.constant 0 : index
      %c0_11 = arith.constant 0 : index
      %13 = vector.load %arg7[%c0_10, %c0_11] : memref<128x128xf32, #tpu.memory_space<vmem>>, vector<128x128xf32>
      tpu.vector_store %arg7[%c0_10, %c0_11], %12 {strides = array<i32>} : memref<128x128xf32, #tpu.memory_space<vmem>>, vector<128x128xf32>,
    } else {
    }
    %c0 = arith.constant 0 : index
    %c0_1 = arith.constant 0 : index
    %3 = vector.load %arg3[%c0, %c0_1] : memref<128x128xf32, #tpu.memory_space<vmem>>, vector<128x128xf32>
    %c0_2 = arith.constant 0 : index
    %c0_3 = arith.constant 0 : index
    %4 = vector.load %arg7[%c0_2, %c0_3] : memref<128x128xf32, #tpu.memory_space<vmem>>, vector<128x128xf32>
    %c0_4 = arith.constant 0 : index
    %c0_5 = arith.constant 0 : index
    %5 = vector.load %arg2[%c0_4, %c0_5] : memref<128x128xf32, #tpu.memory_space<vmem>>, vector<128x128xf32>
    %cst = arith.constant dense<0.000000e+00> : vector<128x128xf32>
    %6 = tpu.matmul %5, %3, %cst {dimension_numbers = #tpu.dot_dimension_numbers<[1], [0], [0], [1], [0, 0, 1, 1], [], []>} : vector<128x128xf32>, vector<128x128xf32>, vector<128x128xf32> -> vector<128x128xf32>
    %7 = arith.addf %4, %6 : vector<128x128xf32>
    %c0_6 = arith.constant 0 : index
    %c0_7 = arith.constant 0 : index
    %8 = vector.load %arg7[%c0_6, %c0_7] : memref<128x128xf32, #tpu.memory_space<vmem>>, vector<128x128xf32>
    tpu.vector_store %arg7[%c0_6, %c0_7], %7 {strides = array<i32>} : memref<128x128xf32, #tpu.memory_space<vmem>>, vector<128x128xf32>,
    %c1_i32 = arith.constant 1 : i32
    %9 = arith.cmpi eq, %arg1, %c1_i32 : i32
    %10 = arith.extui %9 : i1 to i32
    %c0_i32_8 = arith.constant 0 : i32
    %11 = arith.cmpi ne, %10, %c0_i32_8 : i32
    scf.if %11 {
      %c0_9 = arith.constant 0 : index
      %c0_10 = arith.constant 0 : index
      %12 = vector.load %arg7[%c0_9, %c0_10] : memref<128x128xf32, #tpu.memory_space<vmem>>, vector<128x128xf32>
      %c0_11 = arith.constant 0 : index
      %c0_12 = arith.constant 0 : index
      %13 = vector.load %arg4[%c0_11, %c0_12] : memref<128x1xf32, #tpu.memory_space<vmem>>, vector<128x1xf32>
      %14 = vector.broadcast %13 : vector<128x1xf32> to vector<128x128xf32>
      %15 = arith.mulf %12, %14 : vector<128x128xf32>
      %c0_13 = arith.constant 0 : index
      %c0_14 = arith.constant 0 : index
      %16 = vector.load %arg5[%c0_13, %c0_14] : memref<128x128xf32, #tpu.memory_space<vmem>>, vector<128x128xf32>
      %17 = arith.addf %15, %16 : vector<128x128xf32>
      %18 = tpu.iota {dimensions = array<i32: 1>} : vector<128x128xi32>
      %c8_i32 = arith.constant 8 : i32
      %19 = vector.broadcast %c8_i32 : i32 to vector<128x128xi32>
      %20 = arith.cmpi slt, %18, %19 : vector<128x128xi32>
      %cst_15 = arith.constant -1.000000e+30 : f32
      %21 = vector.broadcast %cst_15 : f32 to vector<128x128xf32>
      %22 = arith.select %20, %17, %21 : vector<128x128xi1>, vector<128x128xf32>
      %cst_16 = arith.constant dense<0xFF800000> : vector<128xf32>
      %23 = vector.multi_reduction <maximumf>, %22, %cst_16 [1] : vector<128x128xf32> to vector<128xf32>
      %24 = vector.shape_cast %23 : vector<128xf32> to vector<128x1xf32>
      %25 = vector.broadcast %24 : vector<128x1xf32> to vector<128x128xf32>
      %26 = arith.subf %22, %25 : vector<128x128xf32>
      %27 = math.exp %26 : vector<128x128xf32>
      %cst_17 = arith.constant dense<0.000000e+00> : vector<128xf32>
      %28 = vector.multi_reduction <add>, %27, %cst_17 [1] : vector<128x128xf32> to vector<128xf32>
      %29 = vector.shape_cast %28 : vector<128xf32> to vector<128x1xf32>
      %30 = math.log %29 : vector<128x1xf32>
      %31 = arith.addf %30, %24 : vector<128x1xf32>
      %32 = vector.broadcast %31 : vector<128x1xf32> to vector<128x128xf32>
      %33 = arith.subf %22, %32 : vector<128x128xf32>
      %c0_18 = arith.constant 0 : index
      %c0_19 = arith.constant 0 : index
      %34 = vector.load %arg6[%c0_18, %c0_19] : memref<128x128xf32, #tpu.memory_space<vmem>>, vector<128x128xf32>
      tpu.vector_store %arg6[%c0_18, %c0_19], %33 {strides = array<i32>} : memref<128x128xf32, #tpu.memory_space<vmem>>, vector<128x128xf32>,
    } else {
    }
    return
  }
  func.func @transform_0(%arg0: i32, %arg1: i32) -> (i32, i32) {
    %c0_i32 = arith.constant 0 : i32
    return %arg0, %arg1 : i32, i32
  }
  func.func @transform_1(%arg0: i32, %arg1: i32) -> (i32, i32) {
    %c0_i32 = arith.constant 0 : i32
    %c0_i32_0 = arith.constant 0 : i32
    return %arg1, %c0_i32 : i32, i32
  }
  func.func @transform_2(%arg0: i32, %arg1: i32) -> (i32, i32) {
    %c0_i32 = arith.constant 0 : i32
    %c0_i32_0 = arith.constant 0 : i32
    return %arg0, %c0_i32 : i32, i32
  }
  func.func @transform_3(%arg0: i32, %arg1: i32) -> (i32, i32) {
    %c0_i32 = arith.constant 0 : i32
    %c0_i32_0 = arith.constant 0 : i32
    return %arg0, %c0_i32 : i32, i32
  }
  func.func @transform_4(%arg0: i32, %arg1: i32) -> (i32, i32) {
    %c0_i32 = arith.constant 0 : i32
    %c0_i32_0 = arith.constant 0 : i32
    return %arg0, %c0_i32 : i32, i32
  }
}

</mosaic_0001>

<llo_original>
// kernel: graphsage_forward.4
$region0: #{graphsage_forward.4}
  #allocation0 [shape = 'u32[]', space=smem, size = 0x4, offset = 0x4, fixed_abs, tag = 'smem constant byte address 0x4 - core index']
  #allocation1 [shape = 'u32[144,128]{1,0:T(1,128)}', space=vmem, size = 0x12000, scoped, tag = 'internal scratch']
  %s0 = inlined_call_operand.vmem [shape: f32[256,128], index: 0, kind: input, shape index: {}]
  %s1 = inlined_call_operand.vmem [shape: f32[128,256], index: 1, kind: input, shape index: {}]
  %s2 = inlined_call_operand.vmem [shape: f32[1,256], index: 2, kind: input, shape index: {}]
  %s3 = inlined_call_operand.vmem [shape: f32[256,128], index: 3, kind: output, shape index: {0}]
  %s4 = inlined_call_operand.vmem [shape: f32[256,128], index: 4, kind: output, shape index: {1}]
  %5 = xla_tuple %s3, %s4
  %s6 = sld [smem:[#allocation0]]
  $region53: #{graphsage_forward.4} parent=0
    _
  %s8 = ssub.s32 1, %s6
  %s9 = scalar_select 0, %s8, %s6
  loop: start=0, step=1, limit=4
  $region2: #{graphsage_forward.4} parent=0 // loop_pre_header
    _
  $region3: #{graphsage_forward.4} parent=0 // loop_header
    %s11 = sphi 0, %s15
    %p12 = scmp.ge.s32.totalorder %s11, 4
    %s21 = sphi 0, %s23
    %s24 = sphi 0, %s21
    %s25 = sphi 0, %s24
    %s41 = sphi 0, %s25
    %s45 = sphi 0, %s45
    %s47 = sphi 0, %s45
    %s48 = sphi 0, %s47
    %s62 = sphi 0, %s48
    %s66 = sphi 0, %s66
    %s68 = sphi 0, %s66
    %s69 = sphi 0, %s68
    %s83 = sphi 0, %s69
    %s89 = sphi 0, %s91
    %s92 = sphi 0, %s89
    %s93 = sphi 0, %s92
    %s109 = sphi 0, %s93
    %s115 = sphi 0, %s117
    %s118 = sphi 0, %s115
    %s119 = sphi 0, %s118
    %s135 = sphi 0, %s119
  $region4: #{graphsage_forward.4} parent=0 // loop_header_branch
    %14 = sbr.rel (%p12) target = $region8
  $region5: #{graphsage_forward.4} parent=0 // loop_body
    %s16 = ssub.s32 %s11, 1
    %s17 = ssub.s32 %s11, 2
    %s18 = sadd.s32 %s11, 1
    %s19 = ssub.s32 %s11, %s18
    %p20 = scmp.eq.s32.totalorder %s19, 0
    %s22 = sadd.s32 %s21, 1
    %s23 = scalar_select %p20, %s21, %s22
    %p26 = pneg %p20
    %p27 = scmp.eq.s32.totalorder %s11, 1
    %p28 = por %p26, %p27
    %p29 = scmp.ne.s32.totalorder %s21, %s24
    %p30 = scmp.eq.s32.totalorder %s11, 0
    %p31 = por %p29, %p30
    %p32 = scmp.ne.s32.totalorder %s21, %s24
    %p33 = scmp.eq.s32.totalorder %s16, 1
    %p34 = por %p32, %p33
    %p35 = scmp.ne.s32.totalorder %s24, %s25
    %p36 = scmp.eq.s32.totalorder %s16, 0
    %p37 = por %p35, %p36
    %p38 = scmp.ne.s32.totalorder %s24, %s25
    %p39 = scmp.eq.s32.totalorder %s17, 1
    %p40 = por %p38, %p39
    %p42 = scmp.ne.s32.totalorder %s25, %s41
    %p43 = scmp.eq.s32.totalorder %s17, 0
    %p44 = por %p42, %p43
    %s46 = sadd.s32 %s45, 1
    %p49 = scmp.eq.s32.totalorder %s11, 1
    %p50 = scmp.ne.s32.totalorder %s45, %s47
    %p51 = scmp.eq.s32.totalorder %s11, 0
    %p52 = por %p50, %p51
    %p53 = scmp.ne.s32.totalorder %s45, %s47
    %p54 = scmp.eq.s32.totalorder %s16, 1
    %p55 = por %p53, %p54
    %p56 = scmp.ne.s32.totalorder %s47, %s48
    %p57 = scmp.eq.s32.totalorder %s16, 0
    %p58 = por %p56, %p57
    %p59 = scmp.ne.s32.totalorder %s47, %s48
    %p60 = scmp.eq.s32.totalorder %s17, 1
    %p61 = por %p59, %p60
    %p63 = scmp.ne.s32.totalorder %s48, %s62
    %p64 = scmp.eq.s32.totalorder %s17, 0
    %p65 = por %p63, %p64
    %s67 = sadd.s32 %s66, 1
    %p70 = scmp.eq.s32.totalorder %s11, 1
    %p71 = scmp.ne.s32.totalorder %s66, %s68
    %p72 = scmp.eq.s32.totalorder %s11, 0
    %p73 = por %p71, %p72
    %p74 = scmp.ne.s32.totalorder %s66, %s68
    %p75 = scmp.eq.s32.totalorder %s16, 1
    %p76 = por %p74, %p75
    %p77 = scmp.ne.s32.totalorder %s68, %s69
    %p78 = scmp.eq.s32.totalorder %s16, 0
    %p79 = por %p77, %p78
    %p80 = scmp.ne.s32.totalorder %s68, %s69
    %p81 = scmp.eq.s32.totalorder %s17, 1
    %p82 = por %p80, %p81
    %p84 = scmp.ne.s32.totalorder %s69, %s83
    %p85 = scmp.eq.s32.totalorder %s17, 0
    %p86 = por %p84, %p85
    %s87 = ssub.s32 %s11, %s18
    %p88 = scmp.eq.s32.totalorder %s87, 0
    %s90 = sadd.s32 %s89, 1
    %s91 = scalar_select %p88, %s89, %s90
    %p94 = pneg %p88
    %p95 = scmp.eq.s32.totalorder %s11, 1
    %p96 = por %p94, %p95
    %p97 = scmp.ne.s32.totalorder %s89, %s92
    %p98 = scmp.eq.s32.totalorder %s11, 0
    %p99 = por %p97, %p98
    %p100 = scmp.ne.s32.totalorder %s89, %s92
    %p101 = scmp.eq.s32.totalorder %s16, 1
    %p102 = por %p100, %p101
    %p103 = scmp.ne.s32.totalorder %s92, %s93
    %p104 = scmp.eq.s32.totalorder %s16, 0
    %p105 = por %p103, %p104
    %p106 = scmp.ne.s32.totalorder %s92, %s93
    %p107 = scmp.eq.s32.totalorder %s17, 1
    %p108 = por %p106, %p107
    %p110 = scmp.ne.s32.totalorder %s93, %s109
    %p111 = scmp.eq.s32.totalorder %s17, 0
    %p112 = por %p110, %p111
    %s113 = ssub.s32 %s11, %s18
    %p114 = scmp.eq.s32.totalorder %s113, 0
    %s116 = sadd.s32 %s115, 1
    %s117 = scalar_select %p114, %s115, %s116
    %p120 = pneg %p114
    %p121 = scmp.eq.s32.totalorder %s11, 1
    %p122 = por %p120, %p121
    %p123 = scmp.ne.s32.totalorder %s115, %s118
    %p124 = scmp.eq.s32.totalorder %s11, 0
    %p125 = por %p123, %p124
    %p126 = scmp.ne.s32.totalorder %s115, %s118
    %p127 = scmp.eq.s32.totalorder %s16, 1
    %p128 = por %p126, %p127
    %p129 = scmp.ne.s32.totalorder %s118, %s119
    %p130 = scmp.eq.s32.totalorder %s16, 0
    %p131 = por %p129, %p130
    %p132 = scmp.ne.s32.totalorder %s118, %s119
    %p133 = scmp.eq.s32.totalorder %s17, 1
    %p134 = por %p132, %p133
    %p136 = scmp.ne.s32.totalorder %s119, %s135
    %p137 = scmp.eq.s32.totalorder %s17, 0
    %p138 = por %p136, %p137
    %p139 = scmp.le.s32.totalorder 1, %s11
    %p140 = scmp.lt.s32.totalorder %s11, 3
    %p141 = pnand %p139, %p140
    %p142 = pneg %p141
    // Predicated region
    $region9: #{graphsage_forward.4} parent=5 // pred_check
      _
    $region10: #{graphsage_forward.4} parent=5 // pred_check_branch
      %144 = sbr.rel (%p141) target = $region12
    $region11: #{graphsage_forward.4} parent=5 // pred_region
      %s145 = ssub.s32 %s11, 1
      // Predicated region
      $region13: #{graphsage_forward.4} parent=11 // pred_check
        %p146 = pneg %p58
      $region14: #{graphsage_forward.4} parent=11 // pred_check_branch
        %148 = sbr.rel (%p146) target = $region16
      $region15: #{graphsage_forward.4} parent=11 // pred_region
        _
      $region16: #{graphsage_forward.4} parent=11 // pred_fallthru
        _
      // Predicated region
      $region17: #{graphsage_forward.4} parent=11 // pred_check
        %p149 = pneg %p79
      $region18: #{graphsage_forward.4} parent=11 // pred_check_branch
        %151 = sbr.rel (%p149) target = $region20
      $region19: #{graphsage_forward.4} parent=11 // pred_region
        _
      $region20: #{graphsage_forward.4} parent=11 // pred_fallthru
        _
    $region12: #{graphsage_forward.4} parent=5 // pred_fallthru
      _
    %p152 = scmp.lt.s32.totalorder %s11, 2
    // Predicated region
    $region21: #{graphsage_forward.4} parent=5 // pred_check
      %p153 = pneg %p152
    $region22: #{graphsage_forward.4} parent=5 // pred_check_branch
      %155 = sbr.rel (%p153) target = $region24
    $region23: #{graphsage_forward.4} parent=5 // pred_region
      // Predicated region
      $region25: #{graphsage_forward.4} parent=23 // pred_check
        %p156 = pneg %p31
      $region26: #{graphsage_forward.4} parent=23 // pred_check_branch
        %158 = sbr.rel (%p156) target = $region28
      $region27: #{graphsage_forward.4} parent=23 // pred_region
        %s159 = smul.u32 16, %s11
        %p160 = scmp.lt.s32.totalorder %s159, 31
        %s161 = scalar_select %p160, %s159, 31
        %s162 = smul.addr %s161, 8
        %s163 = scalar_lea.vmem %s0, %s162
        %s164 = smul.u32 16, %s11
      $region28: #{graphsage_forward.4} parent=23 // pred_fallthru
        _
    $region24: #{graphsage_forward.4} parent=5 // pred_fallthru
      _
    %p165 = scmp.le.s32.totalorder 1, %s11
    %p166 = scmp.lt.s32.totalorder %s11, 3
    %p167 = pnand %p165, %p166
    %p168 = pneg %p167
    // Predicated region
    $region29: #{graphsage_forward.4} parent=5 // pred_check
      _
    $region30: #{graphsage_forward.4} parent=5 // pred_check_branch
      %170 = sbr.rel (%p167) target = $region32
    $region31: #{graphsage_forward.4} parent=5 // pred_region
      %s171 = ssub.s32 %s11, 1
      %s172 = smul.u32 16, %s16
      %p173 = scmp.lt.s32.totalorder %s172, 31
      %s174 = scalar_select %p173, %s172, 31
      %s175 = smul.addr %s174, 8
      %s176 = scalar_lea.vmem %s0, %s175
      %p177 = pneg %p37
      %p178 = pneg %p34
      %p179 = pneg %p58
      %p180 = pneg %p55
      %p181 = pneg %p79
      %p182 = pneg %p76
      %p183 = pneg %p105
      %p184 = pneg %p102
      %s185 = smul.u32 16, %s16
      %p186 = scmp.lt.s32.totalorder %s185, 31
      %s187 = scalar_select %p186, %s185, 31
      %s188 = smul.addr %s187, 8
      %s189 = scalar_lea.vmem %s3, %s188
      %p190 = pneg %p131
      %p191 = pneg %p128
      %s192 = smul.u32 16, %s16
      %p193 = scmp.lt.s32.totalorder %s192, 31
      %s194 = scalar_select %p193, %s192, 31
      %s195 = smul.addr %s194, 8
      %s196 = scalar_lea.vmem %s4, %s195
      %s197 = smul.u32 16, %s16
      %p198 = scmp.lt.s32.totalorder %s197, 31
      %s199 = scalar_select %p198, %s197, 31
      %s200 = smul.addr %s199, 8
      %s201 = scalar_lea.vmem %s0, %s200
      %s202 = smul.u32 16, %s16
      %s203 = smul.u32 16, %s16
      %p204 = scmp.lt.s32.totalorder %s203, 31
      %s205 = scalar_select %p204, %s203, 31
      %s206 = smul.addr %s205, 8
      %s207 = scalar_lea.vmem %s3, %s206
      %s208 = smul.u32 16, %s16
      %s209 = smul.u32 16, %s16
      %p210 = scmp.lt.s32.totalorder %s209, 31
      %s211 = scalar_select %p210, %s209, 31
      %s212 = smul.addr %s211, 8
      %s213 = scalar_lea.vmem %s4, %s212
      %s214 = smul.u32 16, %s16
      %v215 = vld [vmem:[%s201] sm:$0xff]
      %v216 = vld [vmem:[%s201 + $0x8] sm:$0xff]
      %v217 = vld [vmem:[%s201 + $0x10] sm:$0xff]
      %v218 = vld [vmem:[%s201 + $0x18] sm:$0xff]
      %v219 = vld [vmem:[%s201 + $0x20] sm:$0xff]
      %v220 = vld [vmem:[%s201 + $0x28] sm:$0xff]
      %v221 = vld [vmem:[%s201 + $0x30] sm:$0xff]
      %v222 = vld [vmem:[%s201 + $0x38] sm:$0xff]
      %v223 = vld [vmem:[%s201 + $0x40] sm:$0xff]
      %v224 = vld [vmem:[%s201 + $0x48] sm:$0xff]
      %v225 = vld [vmem:[%s201 + $0x50] sm:$0xff]
      %v226 = vld [vmem:[%s201 + $0x58] sm:$0xff]
      %v227 = vld [vmem:[%s201 + $0x60] sm:$0xff]
      %v228 = vld [vmem:[%s201 + $0x68] sm:$0xff]
      %v229 = vld [vmem:[%s201 + $0x70] sm:$0xff]
      %v230 = vld [vmem:[%s201 + $0x78] sm:$0xff]
      %v231 = vld [vmem:[%s1] sm:$0xff]
      %v232 = vld [vmem:[%s1 + $0x8] sm:$0xff]
      %v233 = vld [vmem:[%s1 + $0x10] sm:$0xff]
      %v234 = vld [vmem:[%s1 + $0x18] sm:$0xff]
      %v235 = vld [vmem:[%s1 + $0x20] sm:$0xff]
      %v236 = vld [vmem:[%s1 + $0x28] sm:$0xff]
      %v237 = vld [vmem:[%s1 + $0x30] sm:$0xff]
      %v238 = vld [vmem:[%s1 + $0x38] sm:$0xff]
      %v239 = vld [vmem:[%s1 + $0x40] sm:$0xff]
      %v240 = vld [vmem:[%s1 + $0x48] sm:$0xff]
      %v241 = vld [vmem:[%s1 + $0x50] sm:$0xff]
      %v242 = vld [vmem:[%s1 + $0x58] sm:$0xff]
      %v243 = vld [vmem:[%s1 + $0x60] sm:$0xff]
      %v244 = vld [vmem:[%s1 + $0x68] sm:$0xff]
      %v245 = vld [vmem:[%s1 + $0x70] sm:$0xff]
      %v246 = vld [vmem:[%s1 + $0x78] sm:$0xff]
      %v247 = vld [vmem:[%s1 + $0x80] sm:$0xff]
      %v248 = vld [vmem:[%s1 + $0x88] sm:$0xff]
      %v249 = vld [vmem:[%s1 + $0x90] sm:$0xff]
      %v250 = vld [vmem:[%s1 + $0x98] sm:$0xff]
      %v251 = vld [vmem:[%s1 + $0xa0] sm:$0xff]
      %v252 = vld [vmem:[%s1 + $0xa8] sm:$0xff]
      %v253 = vld [vmem:[%s1 + $0xb0] sm:$0xff]
      %v254 = vld [vmem:[%s1 + $0xb8] sm:$0xff]
      %v255 = vld [vmem:[%s1 + $0xc0] sm:$0xff]
      %v256 = vld [vmem:[%s1 + $0xc8] sm:$0xff]
      %v257 = vld [vmem:[%s1 + $0xd0] sm:$0xff]
      %v258 = vld [vmem:[%s1 + $0xd8] sm:$0xff]
      %v259 = vld [vmem:[%s1 + $0xe0] sm:$0xff]
      %v260 = vld [vmem:[%s1 + $0xe8] sm:$0xff]
      %v261 = vld [vmem:[%s1 + $0xf0] sm:$0xff]
      %v262 = vld [vmem:[%s1 + $0xf8] sm:$0xff]
      %v263 = vld [vmem:[%s2] sm:$0x3]
      %v265 = vlaneseq
      %v266 = vshrl.u32 %v265, 7
      %v267 = vsub.s32 0, %v266
      %v268 = vrot.slane %v263, %v267
      %v269 = vlaneseq
      %v270 = vshrl.u32 %v269, 7
      %v271 = vsub.s32 1, %v270
      %v272 = vrot.slane %v263, %v271
      %275 = vmatprep.subr.mxu0 %v262
      %276 = vmatpush1.msra.mxu0 %v261
      %277 = vmatprep.subr.mxu0 %v260
      %278 = vmatpush1.msra.mxu0 %v259
      %279 = vmatprep.subr.mxu0 %v258
      %280 = vmatpush1.msra.mxu0 %v257
      %281 = vmatprep.subr.mxu0 %v256
      %282 = vmatpush1.msra.mxu0 %v255
      %283 = vmatprep.subr.mxu0 %v254
      %284 = vmatpush1.msra.mxu0 %v253
      %285 = vmatprep.subr.mxu0 %v252
      %286 = vmatpush1.msra.mxu0 %v251
      %287 = vmatprep.subr.mxu0 %v250
      %288 = vmatpush1.msra.mxu0 %v249
      %289 = vmatprep.subr.mxu0 %v248
      %290 = vmatpush1.msra.mxu0 %v247
      %291 = vmatprep.subr.mxu0 %v246
      %292 = vmatpush1.msra.mxu0 %v245
      %293 = vmatprep.subr.mxu0 %v244
      %294 = vmatpush1.msra.mxu0 %v243
      %295 = vmatprep.subr.mxu0 %v242
      %296 = vmatpush1.msra.mxu0 %v241
      %297 = vmatprep.subr.mxu0 %v240
      %298 = vmatpush1.msra.mxu0 %v239
      %299 = vmatprep.subr.mxu0 %v238
      %300 = vmatpush1.msra.mxu0 %v237
      %301 = vmatprep.subr.mxu0 %v236
      %302 = vmatpush1.msra.mxu0 %v235
      %303 = vmatprep.subr.mxu0 %v234
      %304 = vmatpush1.msra.mxu0 %v233
      %305 = vmatprep.subr.mxu0 %v232
      %306 = vmatpush1.msra.mxu0 %v231
      %307 = vmatprep.subr.mxu0 0.0
      %308 = vmatpush2.msra.mxu0 0.0
      %309 = vmatprep.subr.mxu0 0.0
      %310 = vmatpush2.msra.mxu0 0.0
      %311 = vmatprep.subr.mxu0 0.0
      %312 = vmatpush2.msra.mxu0 0.0
      %313 = vmatprep.subr.mxu0 0.0
      %314 = vmatpush2.msra.mxu0 0.0
      %315 = vmatprep.subr.mxu0 0.0
      %316 = vmatpush2.msra.mxu0 0.0
      %317 = vmatprep.subr.mxu0 0.0
      %318 = vmatpush2.msra.mxu0 0.0
      %319 = vmatprep.subr.mxu0 0.0
      %320 = vmatpush2.msra.mxu0 0.0
      %321 = vmatprep.subr.mxu0 0.0
      %322 = vmatpush2.msra.mxu0 0.0
      %323 = vmatprep.subr.mxu0 0.0
      %324 = vmatpush2.msra.mxu0 0.0
      %325 = vmatprep.subr.mxu0 0.0
      %326 = vmatpush2.msra.mxu0 0.0
      %327 = vmatprep.subr.mxu0 0.0
      %328 = vmatpush2.msra.mxu0 0.0
      %329 = vmatprep.subr.mxu0 0.0
      %330 = vmatpush2.msra.mxu0 0.0
      %331 = vmatprep.subr.mxu0 0.0
      %332 = vmatpush2.msra.mxu0 0.0
      %333 = vmatprep.subr.mxu0 0.0
      %334 = vmatpush2.msra.mxu0 0.0
      %335 = vmatprep.subr.mxu0 0.0
      %336 = vmatpush2.msra.mxu0 0.0
      %337 = vmatprep.subr.mxu0 0.0
      %338 = vmatpush2.msra.mxu0 0.0
      %339 = vmatprep.mubr.f32.mxu0 0.0
      %340 = vmatmul.mubr.f32.gmra.mxu0 %v215
      %v341 = vpop.f32.mrf.mxu0
      %v342 = vadd.f32 %v268, %v341
      %v343 = vpop.f32.mrf.mxu0
      %v344 = vadd.f32 %v272, %v343
      %345 = vmatprep.mubr.f32.mxu0 0.0
      %346 = vmatmul.mubr.f32.gmra.mxu0 %v216
      %v347 = vpop.f32.mrf.mxu0
      %v348 = vadd.f32 %v268, %v347
      %v349 = vpop.f32.mrf.mxu0
      %v350 = vadd.f32 %v272, %v349
      %351 = vmatprep.mubr.f32.mxu0 0.0
      %352 = vmatmul.mubr.f32.gmra.mxu0 %v217
      %v353 = vpop.f32.mrf.mxu0
      %v354 = vadd.f32 %v268, %v353
      %v355 = vpop.f32.mrf.mxu0
      %v356 = vadd.f32 %v272, %v355
      %357 = vmatprep.mubr.f32.mxu0 0.0
      %358 = vmatmul.mubr.f32.gmra.mxu0 %v218
      %v359 = vpop.f32.mrf.mxu0
      %v360 = vadd.f32 %v268, %v359
      %v361 = vpop.f32.mrf.mxu0
      %v362 = vadd.f32 %v272, %v361
      %363 = vmatprep.mubr.f32.mxu0 0.0
      %364 = vmatmul.mubr.f32.gmra.mxu0 %v219
      %v365 = vpop.f32.mrf.mxu0
      %v366 = vadd.f32 %v268, %v365
      %v367 = vpop.f32.mrf.mxu0
      %v368 = vadd.f32 %v272, %v367
      %369 = vmatprep.mubr.f32.mxu0 0.0
      %370 = vmatmul.mubr.f32.gmra.mxu0 %v220
      %v371 = vpop.f32.mrf.mxu0
      %v372 = vadd.f32 %v268, %v371
      %v373 = vpop.f32.mrf.mxu0
      %v374 = vadd.f32 %v272, %v373
      %375 = vmatprep.mubr.f32.mxu0 0.0
      %376 = vmatmul.mubr.f32.gmra.mxu0 %v221
      %v377 = vpop.f32.mrf.mxu0
      %v378 = vadd.f32 %v268, %v377
      %v379 = vpop.f32.mrf.mxu0
      %v380 = vadd.f32 %v272, %v379
      %381 = vmatprep.mubr.f32.mxu0 0.0
      %382 = vmatmul.mubr.f32.gmra.mxu0 %v222
      %v383 = vpop.f32.mrf.mxu0
      %v384 = vadd.f32 %v268, %v383
      %v385 = vpop.f32.mrf.mxu0
      %v386 = vadd.f32 %v272, %v385
      %387 = vmatprep.mubr.f32.mxu0 0.0
      %388 = vmatmul.mubr.f32.gmra.mxu0 %v223
      %v389 = vpop.f32.mrf.mxu0
      %v390 = vadd.f32 %v268, %v389
      %v391 = vpop.f32.mrf.mxu0
      %v392 = vadd.f32 %v272, %v391
      %393 = vmatprep.mubr.f32.mxu0 0.0
      %394 = vmatmul.mubr.f32.gmra.mxu0 %v224
      %v395 = vpop.f32.mrf.mxu0
      %v396 = vadd.f32 %v268, %v395
      %v397 = vpop.f32.mrf.mxu0
      %v398 = vadd.f32 %v272, %v397
      %399 = vmatprep.mubr.f32.mxu0 0.0
      %400 = vmatmul.mubr.f32.gmra.mxu0 %v225
      %v401 = vpop.f32.mrf.mxu0
      %v402 = vadd.f32 %v268, %v401
      %v403 = vpop.f32.mrf.mxu0
      %v404 = vadd.f32 %v272, %v403
      %405 = vmatprep.mubr.f32.mxu0 0.0
      %406 = vmatmul.mubr.f32.gmra.mxu0 %v226
      %v407 = vpop.f32.mrf.mxu0
      %v408 = vadd.f32 %v268, %v407
      %v409 = vpop.f32.mrf.mxu0
      %v410 = vadd.f32 %v272, %v409
      %411 = vmatprep.mubr.f32.mxu0 0.0
      %412 = vmatmul.mubr.f32.gmra.mxu0 %v227
      %v413 = vpop.f32.mrf.mxu0
      %v414 = vadd.f32 %v268, %v413
      %v415 = vpop.f32.mrf.mxu0
      %v416 = vadd.f32 %v272, %v415
      %417 = vmatprep.mubr.f32.mxu0 0.0
      %418 = vmatmul.mubr.f32.gmra.mxu0 %v228
      %v419 = vpop.f32.mrf.mxu0
      %v420 = vadd.f32 %v268, %v419
      %v421 = vpop.f32.mrf.mxu0
      %v422 = vadd.f32 %v272, %v421
      %423 = vmatprep.mubr.f32.mxu0 0.0
      %424 = vmatmul.mubr.f32.gmra.mxu0 %v229
      %v425 = vpop.f32.mrf.mxu0
      %v426 = vadd.f32 %v268, %v425
      %v427 = vpop.f32.mrf.mxu0
      %v428 = vadd.f32 %v272, %v427
      %429 = vmatprep.mubr.f32.mxu0 0.0
      %430 = vmatmul.mubr.f32.gmra.mxu0 %v230
      %v431 = vpop.f32.mrf.mxu0
      %v432 = vadd.f32 %v268, %v431
      %v433 = vpop.f32.mrf.mxu0
      %v434 = vadd.f32 %v272, %v433
      %435 = vdwg.mxu0
      %436 = vst [vmem:[%s207] sm:$0xff] %v342
      %437 = vst [vmem:[%s207 + $0x8] sm:$0xff] %v348
      %438 = vst [vmem:[%s207 + $0x10] sm:$0xff] %v354
      %439 = vst [vmem:[%s207 + $0x18] sm:$0xff] %v360
      %440 = vst [vmem:[%s207 + $0x20] sm:$0xff] %v366
      %441 = vst [vmem:[%s207 + $0x28] sm:$0xff] %v372
      %442 = vst [vmem:[%s207 + $0x30] sm:$0xff] %v378
      %443 = vst [vmem:[%s207 + $0x38] sm:$0xff] %v384
      %444 = vst [vmem:[%s207 + $0x40] sm:$0xff] %v390
      %445 = vst [vmem:[%s207 + $0x48] sm:$0xff] %v396
      %446 = vst [vmem:[%s207 + $0x50] sm:$0xff] %v402
      %447 = vst [vmem:[%s207 + $0x58] sm:$0xff] %v408
      %448 = vst [vmem:[%s207 + $0x60] sm:$0xff] %v414
      %449 = vst [vmem:[%s207 + $0x68] sm:$0xff] %v420
      %450 = vst [vmem:[%s207 + $0x70] sm:$0xff] %v426
      %451 = vst [vmem:[%s207 + $0x78] sm:$0xff] %v432
      %452 = vst [vmem:[%s213] sm:$0xff] %v344
      %453 = vst [vmem:[%s213 + $0x8] sm:$0xff] %v350
      %454 = vst [vmem:[%s213 + $0x10] sm:$0xff] %v356
      %455 = vst [vmem:[%s213 + $0x18] sm:$0xff] %v362
      %456 = vst [vmem:[%s213 + $0x20] sm:$0xff] %v368
      %457 = vst [vmem:[%s213 + $0x28] sm:$0xff] %v374
      %458 = vst [vmem:[%s213 + $0x30] sm:$0xff] %v380
      %459 = vst [vmem:[%s213 + $0x38] sm:$0xff] %v386
      %460 = vst [vmem:[%s213 + $0x40] sm:$0xff] %v392
      %461 = vst [vmem:[%s213 + $0x48] sm:$0xff] %v398
      %462 = vst [vmem:[%s213 + $0x50] sm:$0xff] %v404
      %463 = vst [vmem:[%s213 + $0x58] sm:$0xff] %v410
      %464 = vst [vmem:[%s213 + $0x60] sm:$0xff] %v416
      %465 = vst [vmem:[%s213 + $0x68] sm:$0xff] %v422
      %466 = vst [vmem:[%s213 + $0x70] sm:$0xff] %v428
      %467 = vst [vmem:[%s213 + $0x78] sm:$0xff] %v434
      %s468 = smul.u32 16, %s16
      %p469 = scmp.lt.s32.totalorder %s468, 31
      %s470 = scalar_select %p469, %s468, 31
      %s471 = smul.addr %s470, 8
      %s472 = scalar_lea.vmem %s3, %s471
      %s473 = smul.u32 16, %s16
      %p474 = scmp.lt.s32.totalorder %s473, 31
      %s475 = scalar_select %p474, %s473, 31
      %s476 = smul.addr %s475, 8
      %s477 = scalar_lea.vmem %s4, %s476
      // Predicated region
      $region33: #{graphsage_forward.4} parent=31 // pred_check
        %p478 = pneg %p102
      $region34: #{graphsage_forward.4} parent=31 // pred_check_branch
        %480 = sbr.rel (%p478) target = $region36
      $region35: #{graphsage_forward.4} parent=31 // pred_region
        %s481 = smul.u32 16, %s16
      $region36: #{graphsage_forward.4} parent=31 // pred_fallthru
        _
      // Predicated region
      $region37: #{graphsage_forward.4} parent=31 // pred_check
        %p482 = pneg %p128
      $region38: #{graphsage_forward.4} parent=31 // pred_check_branch
        %484 = sbr.rel (%p482) target = $region40
      $region39: #{graphsage_forward.4} parent=31 // pred_region
        %s485 = smul.u32 16, %s16
      $region40: #{graphsage_forward.4} parent=31 // pred_fallthru
        _
    $region32: #{graphsage_forward.4} parent=5 // pred_fallthru
      _
    %p486 = scmp.le.s32.totalorder 2, %s11
    // Predicated region
    $region41: #{graphsage_forward.4} parent=5 // pred_check
      %p487 = pneg %p486
    $region42: #{graphsage_forward.4} parent=5 // pred_check_branch
      %489 = sbr.rel (%p487) target = $region44
    $region43: #{graphsage_forward.4} parent=5 // pred_region
      %s490 = ssub.s32 %s11, 2
      // Predicated region
      $region45: #{graphsage_forward.4} parent=43 // pred_check
        %p491 = pneg %p108
      $region46: #{graphsage_forward.4} parent=43 // pred_check_branch
        %493 = sbr.rel (%p491) target = $region48
      $region47: #{graphsage_forward.4} parent=43 // pred_region
        %s494 = smul.u32 16, %s17
        %p495 = scmp.lt.s32.totalorder %s494, 31
        %s496 = scalar_select %p495, %s494, 31
        %s497 = smul.addr %s496, 8
        %s498 = scalar_lea.vmem %s3, %s497
      $region48: #{graphsage_forward.4} parent=43 // pred_fallthru
        _
      // Predicated region
      $region49: #{graphsage_forward.4} parent=43 // pred_check
        %p499 = pneg %p134
      $region50: #{graphsage_forward.4} parent=43 // pred_check_branch
        %501 = sbr.rel (%p499) target = $region52
      $region51: #{graphsage_forward.4} parent=43 // pred_region
        %s502 = smul.u32 16, %s17
        %p503 = scmp.lt.s32.totalorder %s502, 31
        %s504 = scalar_select %p503, %s502, 31
        %s505 = smul.addr %s504, 8
        %s506 = scalar_lea.vmem %s4, %s505
      $region52: #{graphsage_forward.4} parent=43 // pred_fallthru
        _
    $region44: #{graphsage_forward.4} parent=5 // pred_fallthru
      _
  $region6: #{graphsage_forward.4} parent=0 // loop_footer
    %s15 = sadd.s32 1, %s11
  $region7: #{graphsage_forward.4} parent=0 // loop_footer_branch
    %10 = sbr.rel target = $region3
  $region8: #{graphsage_forward.4} parent=0 // loop_exit
    _

// kernel: graphsage_forward.5
$region0: #{graphsage_forward.5}
  #allocation0 [shape = 'u32[]', space=smem, size = 0x4, offset = 0x4, fixed_abs, tag = 'smem constant byte address 0x4 - core index']
  #allocation1 [shape = 'u32[144,128]{1,0:T(1,128)}', space=vmem, size = 0x12000, scoped, tag = 'internal scratch']
  #allocation2 [shape = 'f32[128,128]{1,0:T(8,128)}', space=vmem, size = 0x10000, scoped, tag = 'scratch operand']
  %s0 = inlined_call_operand.hbm [shape: f32[256,256], index: 0, kind: input, shape index: {}]
  %s1 = inlined_call_operand.vmem [shape: f32[256,128], index: 1, kind: input, shape index: {}]
  %s2 = inlined_call_operand.vmem [shape: f32[256,1], index: 2, kind: input, shape index: {}]
  %s3 = inlined_call_operand.vmem [shape: f32[256,128], index: 3, kind: input, shape index: {}]
  %s4 = inlined_call_operand.vmem [shape: f32[256,128], index: 4, kind: output, shape index: {}]
  %s5 = sld [smem:[#allocation0]]
  $region61: #{graphsage_forward.5} parent=0
    _
  %s7 = ssub.s32 1, %s5
  %s8 = scalar_select 0, %s7, %s5
  $region1: #{graphsage_forward.5} parent=0
    #allocation3 [shape = 'u8[131072]{0}', space=vmem, size = 0x20000, scoped, tag = 'input window, operand 0']
    #allocation4 [shape = 's32[2]{0}', space=sflag, size = 0x8, scoped, tag = 'scoped memory for graphsage_forward.5']
    %9 = vsyncpa [#allocation4], 0
    %s10 = scalar_lea.sflag [#allocation4], 1
    %11 = vsyncpa %s10, 0
    loop: start=0, step=1, limit=6
    $region2: #{graphsage_forward.5} parent=1 // loop_pre_header
      _
    $region3: #{graphsage_forward.5} parent=1 // loop_header
      %s13 = sphi 0, %s17
      %p14 = scmp.ge.s32.totalorder %s13, 6
      %s20 = sphi 0, %s32
      %s21 = sphi 0, %s28
      %s22 = sphi 0, %s20
      %s23 = sphi 0, %s21
      %s24 = sphi 0, %s22
      %s25 = sphi 0, %s23
      %s37 = sphi 0, %s39
      %s40 = sphi 0, %s37
      %s41 = sphi 0, %s40
      %s57 = sphi 0, %s41
      %s63 = sphi 0, %s65
      %s66 = sphi 0, %s63
      %s67 = sphi 0, %s66
      %s83 = sphi 0, %s67
      %s89 = sphi 0, %s91
      %s92 = sphi 0, %s89
      %s93 = sphi 0, %s92
      %s109 = sphi 0, %s93
      %s115 = sphi 0, %s117
      %s118 = sphi 0, %s115
      %s119 = sphi 0, %s118
      %s135 = sphi 0, %s119
      %s141 = sphi 0, %s143
      %s144 = sphi 0, %s141
      %s145 = sphi 0, %s144
      %s161 = sphi 0, %s145
    $region4: #{graphsage_forward.5} parent=1 // loop_header_branch
      %16 = sbr.rel (%p14) target = $region8
    $region5: #{graphsage_forward.5} parent=1 // loop_body
      %s18 = ssub.s32 %s13, 1
      %s19 = ssub.s32 %s13, 2
      %s26 = sadd.s32 1, %s21
      %p27 = scmp.ge.s32.totalorder %s26, 2
      %s28 = scalar_select %p27, 0, %s26
      %s29 = sadd.s32 1, %s20
      %s30 = scalar_select %p27, %s29, %s20
      %p31 = scmp.ge.s32.totalorder %s30, 2
      %s32 = scalar_select %p31, 0, %s30
      %s33 = ssub.s32 %s20, %s32
      %s34 = ssub.s32 %s21, %s28
      %s35 = sor.u32 %s33, %s34
      %p36 = scmp.eq.s32.totalorder %s35, 0
      %s38 = sadd.s32 %s37, 1
      %s39 = scalar_select %p36, %s37, %s38
      %p42 = pneg %p36
      %p43 = scmp.eq.s32.totalorder %s13, 3
      %p44 = por %p42, %p43
      %p45 = scmp.ne.s32.totalorder %s37, %s40
      %p46 = scmp.eq.s32.totalorder %s13, 0
      %p47 = por %p45, %p46
      %p48 = scmp.ne.s32.totalorder %s37, %s40
      %p49 = scmp.eq.s32.totalorder %s18, 3
      %p50 = por %p48, %p49
      %p51 = scmp.ne.s32.totalorder %s40, %s41
      %p52 = scmp.eq.s32.totalorder %s18, 0
      %p53 = por %p51, %p52
      %p54 = scmp.ne.s32.totalorder %s40, %s41
      %p55 = scmp.eq.s32.totalorder %s19, 3
      %p56 = por %p54, %p55
      %p58 = scmp.ne.s32.totalorder %s41, %s57
      %p59 = scmp.eq.s32.totalorder %s19, 0
      %p60 = por %p58, %p59
      %s61 = ssub.s32 %s21, %s28
      %p62 = scmp.eq.s32.totalorder %s61, 0
      %s64 = sadd.s32 %s63, 1
      %s65 = scalar_select %p62, %s63, %s64
      %p68 = pneg %p62
      %p69 = scmp.eq.s32.totalorder %s13, 3
      %p70 = por %p68, %p69
      %p71 = scmp.ne.s32.totalorder %s63, %s66
      %p72 = scmp.eq.s32.totalorder %s13, 0
      %p73 = por %p71, %p72
      %p74 = scmp.ne.s32.totalorder %s63, %s66
      %p75 = scmp.eq.s32.totalorder %s18, 3
      %p76 = por %p74, %p75
      %p77 = scmp.ne.s32.totalorder %s66, %s67
      %p78 = scmp.eq.s32.totalorder %s18, 0
      %p79 = por %p77, %p78
      %p80 = scmp.ne.s32.totalorder %s66, %s67
      %p81 = scmp.eq.s32.totalorder %s19, 3
      %p82 = por %p80, %p81
      %p84 = scmp.ne.s32.totalorder %s67, %s83
      %p85 = scmp.eq.s32.totalorder %s19, 0
      %p86 = por %p84, %p85
      %s87 = ssub.s32 %s20, %s32
      %p88 = scmp.eq.s32.totalorder %s87, 0
      %s90 = sadd.s32 %s89, 1
      %s91 = scalar_select %p88, %s89, %s90
      %p94 = pneg %p88
      %p95 = scmp.eq.s32.totalorder %s13, 3
      %p96 = por %p94, %p95
      %p97 = scmp.ne.s32.totalorder %s89, %s92
      %p98 = scmp.eq.s32.totalorder %s13, 0
      %p99 = por %p97, %p98
      %p100 = scmp.ne.s32.totalorder %s89, %s92
      %p101 = scmp.eq.s32.totalorder %s18, 3
      %p102 = por %p100, %p101
      %p103 = scmp.ne.s32.totalorder %s92, %s93
      %p104 = scmp.eq.s32.totalorder %s18, 0
      %p105 = por %p103, %p104
      %p106 = scmp.ne.s32.totalorder %s92, %s93
      %p107 = scmp.eq.s32.totalorder %s19, 3
      %p108 = por %p106, %p107
      %p110 = scmp.ne.s32.totalorder %s93, %s109
      %p111 = scmp.eq.s32.totalorder %s19, 0
      %p112 = por %p110, %p111
      %s113 = ssub.s32 %s20, %s32
      %p114 = scmp.eq.s32.totalorder %s113, 0
      %s116 = sadd.s32 %s115, 1
      %s117 = scalar_select %p114, %s115, %s116
      %p120 = pneg %p114
      %p121 = scmp.eq.s32.totalorder %s13, 3
      %p122 = por %p120, %p121
      %p123 = scmp.ne.s32.totalorder %s115, %s118
      %p124 = scmp.eq.s32.totalorder %s13, 0
      %p125 = por %p123, %p124
      %p126 = scmp.ne.s32.totalorder %s115, %s118
      %p127 = scmp.eq.s32.totalorder %s18, 3
      %p128 = por %p126, %p127
      %p129 = scmp.ne.s32.totalorder %s118, %s119
      %p130 = scmp.eq.s32.totalorder %s18, 0
      %p131 = por %p129, %p130
      %p132 = scmp.ne.s32.totalorder %s118, %s119
      %p133 = scmp.eq.s32.totalorder %s19, 3
      %p134 = por %p132, %p133
      %p136 = scmp.ne.s32.totalorder %s119, %s135
      %p137 = scmp.eq.s32.totalorder %s19, 0
      %p138 = por %p136, %p137
      %s139 = ssub.s32 %s20, %s32
      %p140 = scmp.eq.s32.totalorder %s139, 0
      %s142 = sadd.s32 %s141, 1
      %s143 = scalar_select %p140, %s141, %s142
      %p146 = pneg %p140
      %p147 = scmp.eq.s32.totalorder %s13, 3
      %p148 = por %p146, %p147
      %p149 = scmp.ne.s32.totalorder %s141, %s144
      %p150 = scmp.eq.s32.totalorder %s13, 0
      %p151 = por %p149, %p150
      %p152 = scmp.ne.s32.totalorder %s141, %s144
      %p153 = scmp.eq.s32.totalorder %s18, 3
      %p154 = por %p152, %p153
      %p155 = scmp.ne.s32.totalorder %s144, %s145
      %p156 = scmp.eq.s32.totalorder %s18, 0
      %p157 = por %p155, %p156
      %p158 = scmp.ne.s32.totalorder %s144, %s145
      %p159 = scmp.eq.s32.totalorder %s19, 3
      %p160 = por %p158, %p159
      %p162 = scmp.ne.s32.totalorder %s145, %s161
      %p163 = scmp.eq.s32.totalorder %s19, 0
      %p164 = por %p162, %p163
      %p165 = scmp.le.s32.totalorder 1, %s13
      %p166 = scmp.lt.s32.totalorder %s13, 5
      %p167 = pnand %p165, %p166
      %p168 = pneg %p167
      // Predicated region
      $region9: #{graphsage_forward.5} parent=5 // pred_check
        _
      $region10: #{graphsage_forward.5} parent=5 // pred_check_branch
        %170 = sbr.rel (%p167) target = $region12
      $region11: #{graphsage_forward.5} parent=5 // pred_region
        %s171 = ssub.s32 %s13, 1
      $region12: #{graphsage_forward.5} parent=5 // pred_fallthru
        _
      %p172 = scmp.lt.s32.totalorder %s13, 4
      // Predicated region
      $region13: #{graphsage_forward.5} parent=5 // pred_check
        %p173 = pneg %p172
      $region14: #{graphsage_forward.5} parent=5 // pred_check_branch
        %175 = sbr.rel (%p173) target = $region16
      $region15: #{graphsage_forward.5} parent=5 // pred_region
        // Predicated region
        $region17: #{graphsage_forward.5} parent=15 // pred_check
          %p176 = pneg %p47
        $region18: #{graphsage_forward.5} parent=15 // pred_check_branch
          %178 = sbr.rel (%p176) target = $region20
        $region19: #{graphsage_forward.5} parent=15 // pred_region
          %s179 = sand.u32 %s37, 1
          %s180 = scalar_lea.sflag [#allocation4], %s179
          %s181 = sand.u32 %s37, 1
          %s182 = smul.addr %s181, 128
          %s183 = scalar_lea.vmem [#allocation3], %s182
          %s184 = smul.u32 16, %s20
          %s186 = ssub.s32 2048, 2048
          %187 = vsyncadd %s180, %s186
          %s188 = smul.addr %s184, 2
          %s189 = sadd.s32 %s21, %s188
          %s190 = smul.addr %s189, 128
          %s191 = scalar_lea.hbm %s0, %s190
          %s192 = sshll.u32 %s183, 4
          %s193 = int_to_ptr.vmem [resolvable:$true] %s192
          %198 = dma.hbm_to_vmem [thread:$0]  %s191, 2048, %s193, %s180, 256, 128, 8
        $region20: #{graphsage_forward.5} parent=15 // pred_fallthru
          _
        // Predicated region
        $region21: #{graphsage_forward.5} parent=15 // pred_check
          %p199 = pneg %p73
        $region22: #{graphsage_forward.5} parent=15 // pred_check_branch
          %201 = sbr.rel (%p199) target = $region24
        $region23: #{graphsage_forward.5} parent=15 // pred_region
          %s202 = smul.u32 16, %s21
          %p203 = scmp.lt.s32.totalorder %s202, 31
          %s204 = scalar_select %p203, %s202, 31
          %s205 = smul.addr %s204, 8
          %s206 = scalar_lea.vmem %s1, %s205
          %s207 = smul.u32 16, %s21
        $region24: #{graphsage_forward.5} parent=15 // pred_fallthru
          _
        // Predicated region
        $region25: #{graphsage_forward.5} parent=15 // pred_check
          %p208 = pneg %p99
        $region26: #{graphsage_forward.5} parent=15 // pred_check_branch
          %210 = sbr.rel (%p208) target = $region28
        $region27: #{graphsage_forward.5} parent=15 // pred_region
          %s211 = smul.u32 16, %s20
          %p212 = scmp.lt.s32.totalorder %s211, 31
          %s213 = scalar_select %p212, %s211, 31
          %s214 = smul.addr %s213, 8
          %s215 = scalar_lea.vmem %s2, %s214
          %s216 = smul.u32 16, %s20
        $region28: #{graphsage_forward.5} parent=15 // pred_fallthru
          _
        // Predicated region
        $region29: #{graphsage_forward.5} parent=15 // pred_check
          %p217 = pneg %p125
        $region30: #{graphsage_forward.5} parent=15 // pred_check_branch
          %219 = sbr.rel (%p217) target = $region32
        $region31: #{graphsage_forward.5} parent=15 // pred_region
          %s220 = smul.u32 16, %s20
          %p221 = scmp.lt.s32.totalorder %s220, 31
          %s222 = scalar_select %p221, %s220, 31
          %s223 = smul.addr %s222, 8
          %s224 = scalar_lea.vmem %s3, %s223
          %s225 = smul.u32 16, %s20
        $region32: #{graphsage_forward.5} parent=15 // pred_fallthru
          _
      $region16: #{graphsage_forward.5} parent=5 // pred_fallthru
        _
      %p226 = scmp.le.s32.totalorder 1, %s13
      %p227 = scmp.lt.s32.totalorder %s13, 5
      %p228 = pnand %p226, %p227
      %p229 = pneg %p228
      // Predicated region
      $region33: #{graphsage_forward.5} parent=5 // pred_check
        _
      $region34: #{graphsage_forward.5} parent=5 // pred_check_branch
        %231 = sbr.rel (%p228) target = $region36
      $region35: #{graphsage_forward.5} parent=5 // pred_region
        %s232 = ssub.s32 %s13, 1
        %s233 = sand.u32 %s40, 1
        %s234 = scalar_lea.sflag [#allocation4], %s233
        %s235 = sand.u32 %s40, 1
        %s236 = smul.addr %s235, 128
        %s237 = scalar_lea.vmem [#allocation3], %s236
        // Predicated region
        $region37: #{graphsage_forward.5} parent=35 // pred_check
          %p238 = pneg %p53
        $region38: #{graphsage_forward.5} parent=35 // pred_check_branch
          %240 = sbr.rel (%p238) target = $region40
        $region39: #{graphsage_forward.5} parent=35 // pred_region
          %241 = dma.done %s234, 2048
        $region40: #{graphsage_forward.5} parent=35 // pred_fallthru
          _
        %s242 = sand.u32 %s40, 1
        %s243 = scalar_lea.sflag [#allocation4], %s242
        %s244 = sand.u32 %s40, 1
        %s245 = smul.addr %s244, 128
        %s246 = scalar_lea.vmem [#allocation3], %s245
        %p247 = pneg %p53
        %p248 = pneg %p50
        %s249 = smul.u32 16, %s23
        %p250 = scmp.lt.s32.totalorder %s249, 31
        %s251 = scalar_select %p250, %s249, 31
        %s252 = smul.addr %s251, 8
        %s253 = scalar_lea.vmem %s1, %s252
        %p254 = pneg %p79
        %p255 = pneg %p76
        %s256 = smul.u32 16, %s22
        %p257 = scmp.lt.s32.totalorder %s256, 31
        %s258 = scalar_select %p257, %s256, 31
        %s259 = smul.addr %s258, 8
        %s260 = scalar_lea.vmem %s2, %s259
        %p261 = pneg %p105
        %p262 = pneg %p102
        %s263 = smul.u32 16, %s22
        %p264 = scmp.lt.s32.totalorder %s263, 31
        %s265 = scalar_select %p264, %s263, 31
        %s266 = smul.addr %s265, 8
        %s267 = scalar_lea.vmem %s3, %s266
        %p268 = pneg %p131
        %p269 = pneg %p128
        %p270 = pneg %p157
        %p271 = pneg %p154
        %s272 = smul.u32 16, %s22
        %p273 = scmp.lt.s32.totalorder %s272, 31
        %s274 = scalar_select %p273, %s272, 31
        %s275 = smul.addr %s274, 8
        %s276 = scalar_lea.vmem %s4, %s275
        %s277 = smul.u32 16, %s22
        %s278 = smul.u32 16, %s23
        %p279 = scmp.lt.s32.totalorder %s278, 31
        %s280 = scalar_select %p279, %s278, 31
        %s281 = smul.addr %s280, 8
        %s282 = scalar_lea.vmem %s1, %s281
        %s283 = smul.u32 16, %s23
        %s284 = smul.u32 16, %s22
        %p285 = scmp.lt.s32.totalorder %s284, 31
        %s286 = scalar_select %p285, %s284, 31
        %s287 = smul.addr %s286, 8
        %s288 = scalar_lea.vmem %s2, %s287
        %s289 = smul.u32 16, %s22
        %s290 = smul.u32 16, %s22
        %p291 = scmp.lt.s32.totalorder %s290, 31
        %s292 = scalar_select %p291, %s290, 31
        %s293 = smul.addr %s292, 8
        %s294 = scalar_lea.vmem %s3, %s293
        %s295 = smul.u32 16, %s22
        %s296 = smul.u32 16, %s22
        %p297 = scmp.lt.s32.totalorder %s296, 31
        %s298 = scalar_select %p297, %s296, 31
        %s299 = smul.addr %s298, 8
        %s300 = scalar_lea.vmem %s4, %s299
        %s301 = smul.u32 16, %s22
        %p302 = scmp.eq.s32.totalorder %s23, 0
        // Predicated region
        $region41: #{graphsage_forward.5} parent=35 // pred_check
          %p303 = pneg %p302
        $region42: #{graphsage_forward.5} parent=35 // pred_check_branch
          %305 = sbr.rel (%p303) target = $region44
        $region43: #{graphsage_forward.5} parent=35 // pred_region
          %306 = vst [vmem:[#allocation2] sm:$0xff] 0.0
          %307 = vst [vmem:[#allocation2 + $0x8] sm:$0xff] 0.0
          %308 = vst [vmem:[#allocation2 + $0x10] sm:$0xff] 0.0
          %309 = vst [vmem:[#allocation2 + $0x18] sm:$0xff] 0.0
          %310 = vst [vmem:[#allocation2 + $0x20] sm:$0xff] 0.0
          %311 = vst [vmem:[#allocation2 + $0x28] sm:$0xff] 0.0
          %312 = vst [vmem:[#allocation2 + $0x30] sm:$0xff] 0.0
          %313 = vst [vmem:[#allocation2 + $0x38] sm:$0xff] 0.0
          %314 = vst [vmem:[#allocation2 + $0x40] sm:$0xff] 0.0
          %315 = vst [vmem:[#allocation2 + $0x48] sm:$0xff] 0.0
          %316 = vst [vmem:[#allocation2 + $0x50] sm:$0xff] 0.0
          %317 = vst [vmem:[#allocation2 + $0x58] sm:$0xff] 0.0
          %318 = vst [vmem:[#allocation2 + $0x60] sm:$0xff] 0.0
          %319 = vst [vmem:[#allocation2 + $0x68] sm:$0xff] 0.0
          %320 = vst [vmem:[#allocation2 + $0x70] sm:$0xff] 0.0
          %321 = vst [vmem:[#allocation2 + $0x78] sm:$0xff] 0.0
        $region44: #{graphsage_forward.5} parent=35 // pred_fallthru
          _
        %v322 = vld [vmem:[%s282] sm:$0xff]
        %v323 = vld [vmem:[%s282 + $0x8] sm:$0xff]
        %v324 = vld [vmem:[%s282 + $0x10] sm:$0xff]
        %v325 = vld [vmem:[%s282 + $0x18] sm:$0xff]
        %v326 = vld [vmem:[%s282 + $0x20] sm:$0xff]
        %v327 = vld [vmem:[%s282 + $0x28] sm:$0xff]
        %v328 = vld [vmem:[%s282 + $0x30] sm:$0xff]
        %v329 = vld [vmem:[%s282 + $0x38] sm:$0xff]
        %v330 = vld [vmem:[%s282 + $0x40] sm:$0xff]
        %v331 = vld [vmem:[%s282 + $0x48] sm:$0xff]
        %v332 = vld [vmem:[%s282 + $0x50] sm:$0xff]
        %v333 = vld [vmem:[%s282 + $0x58] sm:$0xff]
        %v334 = vld [vmem:[%s282 + $0x60] sm:$0xff]
        %v335 = vld [vmem:[%s282 + $0x68] sm:$0xff]
        %v336 = vld [vmem:[%s282 + $0x70] sm:$0xff]
        %v337 = vld [vmem:[%s282 + $0x78] sm:$0xff]
        %v338 = vld [vmem:[#allocation2] sm:$0xff]
        %v339 = vld [vmem:[#allocation2 + $0x8] sm:$0xff]
        %v340 = vld [vmem:[#allocation2 + $0x10] sm:$0xff]
        %v341 = vld [vmem:[#allocation2 + $0x18] sm:$0xff]
        %v342 = vld [vmem:[#allocation2 + $0x20] sm:$0xff]
        %v343 = vld [vmem:[#allocation2 + $0x28] sm:$0xff]
        %v344 = vld [vmem:[#allocation2 + $0x30] sm:$0xff]
        %v345 = vld [vmem:[#allocation2 + $0x38] sm:$0xff]
        %v346 = vld [vmem:[#allocation2 + $0x40] sm:$0xff]
        %v347 = vld [vmem:[#allocation2 + $0x48] sm:$0xff]
        %v348 = vld [vmem:[#allocation2 + $0x50] sm:$0xff]
        %v349 = vld [vmem:[#allocation2 + $0x58] sm:$0xff]
        %v350 = vld [vmem:[#allocation2 + $0x60] sm:$0xff]
        %v351 = vld [vmem:[#allocation2 + $0x68] sm:$0xff]
        %v352 = vld [vmem:[#allocation2 + $0x70] sm:$0xff]
        %v353 = vld [vmem:[#allocation2 + $0x78] sm:$0xff]
        %v354 = vld [vmem:[%s237] sm:$0xff]
        %v355 = vld [vmem:[%s237 + $0x8] sm:$0xff]
        %v356 = vld [vmem:[%s237 + $0x10] sm:$0xff]
        %v357 = vld [vmem:[%s237 + $0x18] sm:$0xff]
        %v358 = vld [vmem:[%s237 + $0x20] sm:$0xff]
        %v359 = vld [vmem:[%s237 + $0x28] sm:$0xff]
        %v360 = vld [vmem:[%s237 + $0x30] sm:$0xff]
        %v361 = vld [vmem:[%s237 + $0x38] sm:$0xff]
        %v362 = vld [vmem:[%s237 + $0x40] sm:$0xff]
        %v363 = vld [vmem:[%s237 + $0x48] sm:$0xff]
        %v364 = vld [vmem:[%s237 + $0x50] sm:$0xff]
        %v365 = vld [vmem:[%s237 + $0x58] sm:$0xff]
        %v366 = vld [vmem:[%s237 + $0x60] sm:$0xff]
        %v367 = vld [vmem:[%s237 + $0x68] sm:$0xff]
        %v368 = vld [vmem:[%s237 + $0x70] sm:$0xff]
        %v369 = vld [vmem:[%s237 + $0x78] sm:$0xff]
        %370 = vmatprep.subr.mxu0 0.0
        %371 = vmatpush1.msra.mxu0 %v337
        %372 = vmatprep.subr.mxu0 0.0
        %373 = vmatpush1.msra.mxu0 %v336
        %374 = vmatprep.subr.mxu0 0.0
        %375 = vmatpush1.msra.mxu0 %v335
        %376 = vmatprep.subr.mxu0 0.0
        %377 = vmatpush1.msra.mxu0 %v334
        %378 = vmatprep.subr.mxu0 0.0
        %379 = vmatpush1.msra.mxu0 %v333
        %380 = vmatprep.subr.mxu0 0.0
        %381 = vmatpush1.msra.mxu0 %v332
        %382 = vmatprep.subr.mxu0 0.0
        %383 = vmatpush1.msra.mxu0 %v331
        %384 = vmatprep.subr.mxu0 0.0
        %385 = vmatpush1.msra.mxu0 %v330
        %386 = vmatprep.subr.mxu0 0.0
        %387 = vmatpush1.msra.mxu0 %v329
        %388 = vmatprep.subr.mxu0 0.0
        %389 = vmatpush1.msra.mxu0 %v328
        %390 = vmatprep.subr.mxu0 0.0
        %391 = vmatpush1.msra.mxu0 %v327
        %392 = vmatprep.subr.mxu0 0.0
        %393 = vmatpush1.msra.mxu0 %v326
        %394 = vmatprep.subr.mxu0 0.0
        %395 = vmatpush1.msra.mxu0 %v325
        %396 = vmatprep.subr.mxu0 0.0
        %397 = vmatpush1.msra.mxu0 %v324
        %398 = vmatprep.subr.mxu0 0.0
        %399 = vmatpush1.msra.mxu0 %v323
        %400 = vmatprep.subr.mxu0 0.0
        %401 = vmatpush1.msra.mxu0 %v322
        %402 = vmatprep.subr.mxu0 0.0
        %403 = vmatpush2.msra.mxu0 0.0
        %404 = vmatprep.subr.mxu0 0.0
        %405 = vmatpush2.msra.mxu0 0.0
        %406 = vmatprep.subr.mxu0 0.0
        %407 = vmatpush2.msra.mxu0 0.0
        %408 = vmatprep.subr.mxu0 0.0
        %409 = vmatpush2.msra.mxu0 0.0
        %410 = vmatprep.subr.mxu0 0.0
        %411 = vmatpush2.msra.mxu0 0.0
        %412 = vmatprep.subr.mxu0 0.0
        %413 = vmatpush2.msra.mxu0 0.0
        %414 = vmatprep.subr.mxu0 0.0
        %415 = vmatpush2.msra.mxu0 0.0
        %416 = vmatprep.subr.mxu0 0.0
        %417 = vmatpush2.msra.mxu0 0.0
        %418 = vmatprep.subr.mxu0 0.0
        %419 = vmatpush2.msra.mxu0 0.0
        %420 = vmatprep.subr.mxu0 0.0
        %421 = vmatpush2.msra.mxu0 0.0
        %422 = vmatprep.subr.mxu0 0.0
        %423 = vmatpush2.msra.mxu0 0.0
        %424 = vmatprep.subr.mxu0 0.0
        %425 = vmatpush2.msra.mxu0 0.0
        %426 = vmatprep.subr.mxu0 0.0
        %427 = vmatpush2.msra.mxu0 0.0
        %428 = vmatprep.subr.mxu0 0.0
        %429 = vmatpush2.msra.mxu0 0.0
        %430 = vmatprep.subr.mxu0 0.0
        %431 = vmatpush2.msra.mxu0 0.0
        %432 = vmatprep.subr.mxu0 0.0
        %433 = vmatpush2.msra.mxu0 0.0
        %434 = vmatprep.mubr.f32.mxu0 0.0
        %435 = vmatmul.mubr.f32.gmra.mxu0 %v354
        %v436 = vpop.f32.mrf.mxu0
        %v437 = vadd.f32 0.0, %v436
        %v438 = vpop.f32.mrf.mxu0
        %439 = vmatprep.mubr.f32.mxu0 0.0
        %440 = vmatmul.mubr.f32.gmra.mxu0 %v355
        %v441 = vpop.f32.mrf.mxu0
        %v442 = vadd.f32 0.0, %v441
        %v443 = vpop.f32.mrf.mxu0
        %444 = vmatprep.mubr.f32.mxu0 0.0
        %445 = vmatmul.mubr.f32.gmra.mxu0 %v356
        %v446 = vpop.f32.mrf.mxu0
        %v447 = vadd.f32 0.0, %v446
        %v448 = vpop.f32.mrf.mxu0
        %449 = vmatprep.mubr.f32.mxu0 0.0
        %450 = vmatmul.mubr.f32.gmra.mxu0 %v357
        %v451 = vpop.f32.mrf.mxu0
        %v452 = vadd.f32 0.0, %v451
        %v453 = vpop.f32.mrf.mxu0
        %454 = vmatprep.mubr.f32.mxu0 0.0
        %455 = vmatmul.mubr.f32.gmra.mxu0 %v358
        %v456 = vpop.f32.mrf.mxu0
        %v457 = vadd.f32 0.0, %v456
        %v458 = vpop.f32.mrf.mxu0
        %459 = vmatprep.mubr.f32.mxu0 0.0
        %460 = vmatmul.mubr.f32.gmra.mxu0 %v359
        %v461 = vpop.f32.mrf.mxu0
        %v462 = vadd.f32 0.0, %v461
        %v463 = vpop.f32.mrf.mxu0
        %464 = vmatprep.mubr.f32.mxu0 0.0
        %465 = vmatmul.mubr.f32.gmra.mxu0 %v360
        %v466 = vpop.f32.mrf.mxu0
        %v467 = vadd.f32 0.0, %v466
        %v468 = vpop.f32.mrf.mxu0
        %469 = vmatprep.mubr.f32.mxu0 0.0
        %470 = vmatmul.mubr.f32.gmra.mxu0 %v361
        %v471 = vpop.f32.mrf.mxu0
        %v472 = vadd.f32 0.0, %v471
        %v473 = vpop.f32.mrf.mxu0
        %474 = vmatprep.mubr.f32.mxu0 0.0
        %475 = vmatmul.mubr.f32.gmra.mxu0 %v362
        %v476 = vpop.f32.mrf.mxu0
        %v477 = vadd.f32 0.0, %v476
        %v478 = vpop.f32.mrf.mxu0
        %479 = vmatprep.mubr.f32.mxu0 0.0
        %480 = vmatmul.mubr.f32.gmra.mxu0 %v363
        %v481 = vpop.f32.mrf.mxu0
        %v482 = vadd.f32 0.0, %v481
        %v483 = vpop.f32.mrf.mxu0
        %484 = vmatprep.mubr.f32.mxu0 0.0
        %485 = vmatmul.mubr.f32.gmra.mxu0 %v364
        %v486 = vpop.f32.mrf.mxu0
        %v487 = vadd.f32 0.0, %v486
        %v488 = vpop.f32.mrf.mxu0
        %489 = vmatprep.mubr.f32.mxu0 0.0
        %490 = vmatmul.mubr.f32.gmra.mxu0 %v365
        %v491 = vpop.f32.mrf.mxu0
        %v492 = vadd.f32 0.0, %v491
        %v493 = vpop.f32.mrf.mxu0
        %494 = vmatprep.mubr.f32.mxu0 0.0
        %495 = vmatmul.mubr.f32.gmra.mxu0 %v366
        %v496 = vpop.f32.mrf.mxu0
        %v497 = vadd.f32 0.0, %v496
        %v498 = vpop.f32.mrf.mxu0
        %499 = vmatprep.mubr.f32.mxu0 0.0
        %500 = vmatmul.mubr.f32.gmra.mxu0 %v367
        %v501 = vpop.f32.mrf.mxu0
        %v502 = vadd.f32 0.0, %v501
        %v503 = vpop.f32.mrf.mxu0
        %504 = vmatprep.mubr.f32.mxu0 0.0
        %505 = vmatmul.mubr.f32.gmra.mxu0 %v368
        %v506 = vpop.f32.mrf.mxu0
        %v507 = vadd.f32 0.0, %v506
        %v508 = vpop.f32.mrf.mxu0
        %509 = vmatprep.mubr.f32.mxu0 0.0
        %510 = vmatmul.mubr.f32.gmra.mxu0 %v369
        %v511 = vpop.f32.mrf.mxu0
        %v512 = vadd.f32 0.0, %v511
        %v513 = vpop.f32.mrf.mxu0
        %514 = vdwg.mxu0
        %v515 = vadd.f32 %v338, %v437
        %v516 = vadd.f32 %v339, %v442
        %v517 = vadd.f32 %v340, %v447
        %v518 = vadd.f32 %v341, %v452
        %v519 = vadd.f32 %v342, %v457
        %v520 = vadd.f32 %v343, %v462
        %v521 = vadd.f32 %v344, %v467
        %v522 = vadd.f32 %v345, %v472
        %v523 = vadd.f32 %v346, %v477
        %v524 = vadd.f32 %v347, %v482
        %v525 = vadd.f32 %v348, %v487
        %v526 = vadd.f32 %v349, %v492
        %v527 = vadd.f32 %v350, %v497
        %v528 = vadd.f32 %v351, %v502
        %v529 = vadd.f32 %v352, %v507
        %v530 = vadd.f32 %v353, %v512
        %531 = vst [vmem:[#allocation2] sm:$0xff] %v515
        %532 = vst [vmem:[#allocation2 + $0x8] sm:$0xff] %v516
        %533 = vst [vmem:[#allocation2 + $0x10] sm:$0xff] %v517
        %534 = vst [vmem:[#allocation2 + $0x18] sm:$0xff] %v518
        %535 = vst [vmem:[#allocation2 + $0x20] sm:$0xff] %v519
        %536 = vst [vmem:[#allocation2 + $0x28] sm:$0xff] %v520
        %537 = vst [vmem:[#allocation2 + $0x30] sm:$0xff] %v521
        %538 = vst [vmem:[#allocation2 + $0x38] sm:$0xff] %v522
        %539 = vst [vmem:[#allocation2 + $0x40] sm:$0xff] %v523
        %540 = vst [vmem:[#allocation2 + $0x48] sm:$0xff] %v524
        %541 = vst [vmem:[#allocation2 + $0x50] sm:$0xff] %v525
        %542 = vst [vmem:[#allocation2 + $0x58] sm:$0xff] %v526
        %543 = vst [vmem:[#allocation2 + $0x60] sm:$0xff] %v527
        %544 = vst [vmem:[#allocation2 + $0x68] sm:$0xff] %v528
        %545 = vst [vmem:[#allocation2 + $0x70] sm:$0xff] %v529
        %546 = vst [vmem:[#allocation2 + $0x78] sm:$0xff] %v530
        %p547 = scmp.eq.s32.totalorder %s23, 1
        // Predicated region
        $region45: #{graphsage_forward.5} parent=35 // pred_check
          %p548 = pneg %p547
        $region46: #{graphsage_forward.5} parent=35 // pred_check_branch
          %550 = sbr.rel (%p548) target = $region48
        $region47: #{graphsage_forward.5} parent=35 // pred_region
          %v551 = vld [vmem:[#allocation2] sm:$0xff]
          %v552 = vld [vmem:[#allocation2 + $0x8] sm:$0xff]
          %v553 = vld [vmem:[#allocation2 + $0x10] sm:$0xff]
          %v554 = vld [vmem:[#allocation2 + $0x18] sm:$0xff]
          %v555 = vld [vmem:[#allocation2 + $0x20] sm:$0xff]
          %v556 = vld [vmem:[#allocation2 + $0x28] sm:$0xff]
          %v557 = vld [vmem:[#allocation2 + $0x30] sm:$0xff]
          %v558 = vld [vmem:[#allocation2 + $0x38] sm:$0xff]
          %v559 = vld [vmem:[#allocation2 + $0x40] sm:$0xff]
          %v560 = vld [vmem:[#allocation2 + $0x48] sm:$0xff]
          %v561 = vld [vmem:[#allocation2 + $0x50] sm:$0xff]
          %v562 = vld [vmem:[#allocation2 + $0x58] sm:$0xff]
          %v563 = vld [vmem:[#allocation2 + $0x60] sm:$0xff]
          %v564 = vld [vmem:[#allocation2 + $0x68] sm:$0xff]
          %v565 = vld [vmem:[#allocation2 + $0x70] sm:$0xff]
          %v566 = vld [vmem:[#allocation2 + $0x78] sm:$0xff]
          %v567 = vld [vmem:[%s288] sm:$0xff]
          %v568 = vld [vmem:[%s288 + $0x8] sm:$0xff]
          %v569 = vld [vmem:[%s288 + $0x10] sm:$0xff]
          %v570 = vld [vmem:[%s288 + $0x18] sm:$0xff]
          %v571 = vld [vmem:[%s288 + $0x20] sm:$0xff]
          %v572 = vld [vmem:[%s288 + $0x28] sm:$0xff]
          %v573 = vld [vmem:[%s288 + $0x30] sm:$0xff]
          %v574 = vld [vmem:[%s288 + $0x38] sm:$0xff]
          %v575 = vld [vmem:[%s288 + $0x40] sm:$0xff]
          %v576 = vld [vmem:[%s288 + $0x48] sm:$0xff]
          %v577 = vld [vmem:[%s288 + $0x50] sm:$0xff]
          %v578 = vld [vmem:[%s288 + $0x58] sm:$0xff]
          %v579 = vld [vmem:[%s288 + $0x60] sm:$0xff]
          %v580 = vld [vmem:[%s288 + $0x68] sm:$0xff]
          %v581 = vld [vmem:[%s288 + $0x70] sm:$0xff]
          %v582 = vld [vmem:[%s288 + $0x78] sm:$0xff]
          %584 = vset.pattern.permute.xlu0 0
          %585 = vperm.xlu0 %584, %v567
          %v586 = vpop.permute.xlu0 %585
          %589 = vset.pattern.permute.xlu0 0
          %590 = vperm.xlu0 %589, %v568
          %v591 = vpop.permute.xlu0 %590
          %594 = vset.pattern.permute.xlu0 0
          %595 = vperm.xlu0 %594, %v569
          %v596 = vpop.permute.xlu0 %595
          %599 = vset.pattern.permute.xlu0 0
          %600 = vperm.xlu0 %599, %v570
          %v601 = vpop.permute.xlu0 %600
          %604 = vset.pattern.permute.xlu0 0
          %605 = vperm.xlu0 %604, %v571
          %v606 = vpop.permute.xlu0 %605
          %609 = vset.pattern.permute.xlu0 0
          %610 = vperm.xlu0 %609, %v572
          %v611 = vpop.permute.xlu0 %610
          %614 = vset.pattern.permute.xlu0 0
          %615 = vperm.xlu0 %614, %v573
          %v616 = vpop.permute.xlu0 %615
          %619 = vset.pattern.permute.xlu0 0
          %620 = vperm.xlu0 %619, %v574
          %v621 = vpop.permute.xlu0 %620
          %624 = vset.pattern.permute.xlu0 0
          %625 = vperm.xlu0 %624, %v575
          %v626 = vpop.permute.xlu0 %625
          %629 = vset.pattern.permute.xlu0 0
          %630 = vperm.xlu0 %629, %v576
          %v631 = vpop.permute.xlu0 %630
          %634 = vset.pattern.permute.xlu0 0
          %635 = vperm.xlu0 %634, %v577
          %v636 = vpop.permute.xlu0 %635
          %639 = vset.pattern.permute.xlu0 0
          %640 = vperm.xlu0 %639, %v578
          %v641 = vpop.permute.xlu0 %640
          %644 = vset.pattern.permute.xlu0 0
          %645 = vperm.xlu0 %644, %v579
          %v646 = vpop.permute.xlu0 %645
          %649 = vset.pattern.permute.xlu0 0
          %650 = vperm.xlu0 %649, %v580
          %v651 = vpop.permute.xlu0 %650
          %654 = vset.pattern.permute.xlu0 0
          %655 = vperm.xlu0 %654, %v581
          %v656 = vpop.permute.xlu0 %655
          %659 = vset.pattern.permute.xlu0 0
          %660 = vperm.xlu0 %659, %v582
          %v661 = vpop.permute.xlu0 %660
          %v663 = vmul.f32 %v551, %v586
          %v664 = vmul.f32 %v552, %v591
          %v665 = vmul.f32 %v553, %v596
          %v666 = vmul.f32 %v554, %v601
          %v667 = vmul.f32 %v555, %v606
          %v668 = vmul.f32 %v556, %v611
          %v669 = vmul.f32 %v557, %v616
          %v670 = vmul.f32 %v558, %v621
          %v671 = vmul.f32 %v559, %v626
          %v672 = vmul.f32 %v560, %v631
          %v673 = vmul.f32 %v561, %v636
          %v674 = vmul.f32 %v562, %v641
          %v675 = vmul.f32 %v563, %v646
          %v676 = vmul.f32 %v564, %v651
          %v677 = vmul.f32 %v565, %v656
          %v678 = vmul.f32 %v566, %v661
          %v679 = vld [vmem:[%s294] sm:$0xff]
          %v680 = vld [vmem:[%s294 + $0x8] sm:$0xff]
          %v681 = vld [vmem:[%s294 + $0x10] sm:$0xff]
          %v682 = vld [vmem:[%s294 + $0x18] sm:$0xff]
          %v683 = vld [vmem:[%s294 + $0x20] sm:$0xff]
          %v684 = vld [vmem:[%s294 + $0x28] sm:$0xff]
          %v685 = vld [vmem:[%s294 + $0x30] sm:$0xff]
          %v686 = vld [vmem:[%s294 + $0x38] sm:$0xff]
          %v687 = vld [vmem:[%s294 + $0x40] sm:$0xff]
          %v688 = vld [vmem:[%s294 + $0x48] sm:$0xff]
          %v689 = vld [vmem:[%s294 + $0x50] sm:$0xff]
          %v690 = vld [vmem:[%s294 + $0x58] sm:$0xff]
          %v691 = vld [vmem:[%s294 + $0x60] sm:$0xff]
          %v692 = vld [vmem:[%s294 + $0x68] sm:$0xff]
          %v693 = vld [vmem:[%s294 + $0x70] sm:$0xff]
          %v694 = vld [vmem:[%s294 + $0x78] sm:$0xff]
          %v695 = vadd.f32 %v663, %v679
          %v696 = vadd.f32 %v664, %v680
          %v697 = vadd.f32 %v665, %v681
          %v698 = vadd.f32 %v666, %v682
          %v699 = vadd.f32 %v667, %v683
          %v700 = vadd.f32 %v668, %v684
          %v701 = vadd.f32 %v669, %v685
          %v702 = vadd.f32 %v670, %v686
          %v703 = vadd.f32 %v671, %v687
          %v704 = vadd.f32 %v672, %v688
          %v705 = vadd.f32 %v673, %v689
          %v706 = vadd.f32 %v674, %v690
          %v707 = vadd.f32 %v675, %v691
          %v708 = vadd.f32 %v676, %v692
          %v709 = vadd.f32 %v677, %v693
          %v710 = vadd.f32 %v678, %v694
          %v711 = vmax.f32 %v695, 0.0
          %v712 = vmax.f32 %v696, 0.0
          %v713 = vmax.f32 %v697, 0.0
          %v714 = vmax.f32 %v698, 0.0
          %v715 = vmax.f32 %v699, 0.0
          %v716 = vmax.f32 %v700, 0.0
          %v717 = vmax.f32 %v701, 0.0
          %v718 = vmax.f32 %v702, 0.0
          %v719 = vmax.f32 %v703, 0.0
          %v720 = vmax.f32 %v704, 0.0
          %v721 = vmax.f32 %v705, 0.0
          %v722 = vmax.f32 %v706, 0.0
          %v723 = vmax.f32 %v707, 0.0
          %v724 = vmax.f32 %v708, 0.0
          %v725 = vmax.f32 %v709, 0.0
          %v726 = vmax.f32 %v710, 0.0
          %727 = vst [vmem:[%s300] sm:$0xff] %v711
          %728 = vst [vmem:[%s300 + $0x8] sm:$0xff] %v712
          %729 = vst [vmem:[%s300 + $0x10] sm:$0xff] %v713
          %730 = vst [vmem:[%s300 + $0x18] sm:$0xff] %v714
          %731 = vst [vmem:[%s300 + $0x20] sm:$0xff] %v715
          %732 = vst [vmem:[%s300 + $0x28] sm:$0xff] %v716
          %733 = vst [vmem:[%s300 + $0x30] sm:$0xff] %v717
          %734 = vst [vmem:[%s300 + $0x38] sm:$0xff] %v718
          %735 = vst [vmem:[%s300 + $0x40] sm:$0xff] %v719
          %736 = vst [vmem:[%s300 + $0x48] sm:$0xff] %v720
          %737 = vst [vmem:[%s300 + $0x50] sm:$0xff] %v721
          %738 = vst [vmem:[%s300 + $0x58] sm:$0xff] %v722
          %739 = vst [vmem:[%s300 + $0x60] sm:$0xff] %v723
          %740 = vst [vmem:[%s300 + $0x68] sm:$0xff] %v724
          %741 = vst [vmem:[%s300 + $0x70] sm:$0xff] %v725
          %742 = vst [vmem:[%s300 + $0x78] sm:$0xff] %v726
        $region48: #{graphsage_forward.5} parent=35 // pred_fallthru
          _
        %s743 = smul.u32 16, %s22
        %p744 = scmp.lt.s32.totalorder %s743, 31
        %s745 = scalar_select %p744, %s743, 31
        %s746 = smul.addr %s745, 8
        %s747 = scalar_lea.vmem %s4, %s746
        // Predicated region
        $region49: #{graphsage_forward.5} parent=35 // pred_check
          %p748 = pneg %p154
        $region50: #{graphsage_forward.5} parent=35 // pred_check_branch
          %750 = sbr.rel (%p748) target = $region52
        $region51: #{graphsage_forward.5} parent=35 // pred_region
          %s751 = smul.u32 16, %s22
        $region52: #{graphsage_forward.5} parent=35 // pred_fallthru
          _
      $region36: #{graphsage_forward.5} parent=5 // pred_fallthru
        _
      %p752 = scmp.le.s32.totalorder 2, %s13
      // Predicated region
      $region53: #{graphsage_forward.5} parent=5 // pred_check
        %p753 = pneg %p752
      $region54: #{graphsage_forward.5} parent=5 // pred_check_branch
        %755 = sbr.rel (%p753) target = $region56
      $region55: #{graphsage_forward.5} parent=5 // pred_region
        %s756 = ssub.s32 %s13, 2
        // Predicated region
        $region57: #{graphsage_forward.5} parent=55 // pred_check
          %p757 = pneg %p160
        $region58: #{graphsage_forward.5} parent=55 // pred_check_branch
          %759 = sbr.rel (%p757) target = $region60
        $region59: #{graphsage_forward.5} parent=55 // pred_region
          %s760 = smul.u32 16, %s24
          %p761 = scmp.lt.s32.totalorder %s760, 31
          %s762 = scalar_select %p761, %s760, 31
          %s763 = smul.addr %s762, 8
          %s764 = scalar_lea.vmem %s4, %s763
        $region60: #{graphsage_forward.5} parent=55 // pred_fallthru
          _
      $region56: #{graphsage_forward.5} parent=5 // pred_fallthru
        _
    $region6: #{graphsage_forward.5} parent=1 // loop_footer
      %s17 = sadd.s32 1, %s13
    $region7: #{graphsage_forward.5} parent=1 // loop_footer_branch
      %12 = sbr.rel target = $region3
    $region8: #{graphsage_forward.5} parent=1 // loop_exit
      _
    %765 = vsyncpa [#allocation4], 1
    %s766 = scalar_lea.sflag [#allocation4], 1
    %767 = vsyncpa %s766, 1

// kernel: graphsage_forward.7
$region0: #{graphsage_forward.7}
  #allocation0 [shape = 'u32[]', space=smem, size = 0x4, offset = 0x4, fixed_abs, tag = 'smem constant byte address 0x4 - core index']
  #allocation1 [shape = 'u32[144,128]{1,0:T(1,128)}', space=vmem, size = 0x12000, scoped, tag = 'internal scratch']
  #allocation2 [shape = 'f32[128,128]{1,0:T(8,128)}', space=vmem, size = 0x10000, scoped, tag = 'scratch operand']
  %s0 = inlined_call_operand.vmem [shape: f32[256,256], index: 0, kind: input, shape index: {}]
  %s1 = inlined_call_operand.vmem [shape: f32[256,128], index: 1, kind: input, shape index: {}]
  %s2 = inlined_call_operand.vmem [shape: f32[256,1], index: 2, kind: input, shape index: {}]
  %s3 = inlined_call_operand.vmem [shape: f32[256,128], index: 3, kind: input, shape index: {}]
  %s4 = inlined_call_operand.vmem [shape: f32[256,128], index: 4, kind: output, shape index: {}]
  %s5 = sld [smem:[#allocation0]]
  $region95: #{graphsage_forward.7} parent=0
    _
  %s7 = ssub.s32 1, %s5
  %s8 = scalar_select 0, %s7, %s5
  $region1: #{graphsage_forward.7} parent=0
    #allocation3 [shape = 'u8[131072]{0}', space=vmem, size = 0x20000, scoped, tag = 'input window, operand 0']
    loop: start=0, step=1, limit=6
    $region2: #{graphsage_forward.7} parent=1 // loop_pre_header
      _
    $region3: #{graphsage_forward.7} parent=1 // loop_header
      %s10 = sphi 0, %s14
      %p11 = scmp.ge.s32.totalorder %s10, 6
      %s17 = sphi 0, %s29
      %s18 = sphi 0, %s25
      %s19 = sphi 0, %s17
      %s20 = sphi 0, %s18
      %s21 = sphi 0, %s19
      %s22 = sphi 0, %s20
      %s34 = sphi 0, %s36
      %s37 = sphi 0, %s34
      %s38 = sphi 0, %s37
      %s54 = sphi 0, %s38
      %s60 = sphi 0, %s62
      %s63 = sphi 0, %s60
      %s64 = sphi 0, %s63
      %s80 = sphi 0, %s64
      %s86 = sphi 0, %s88
      %s89 = sphi 0, %s86
      %s90 = sphi 0, %s89
      %s106 = sphi 0, %s90
      %s112 = sphi 0, %s114
      %s115 = sphi 0, %s112
      %s116 = sphi 0, %s115
      %s132 = sphi 0, %s116
      %s138 = sphi 0, %s140
      %s141 = sphi 0, %s138
      %s142 = sphi 0, %s141
      %s158 = sphi 0, %s142
    $region4: #{graphsage_forward.7} parent=1 // loop_header_branch
      %13 = sbr.rel (%p11) target = $region8
    $region5: #{graphsage_forward.7} parent=1 // loop_body
      %s15 = ssub.s32 %s10, 1
      %s16 = ssub.s32 %s10, 2
      %s23 = sadd.s32 1, %s18
      %p24 = scmp.ge.s32.totalorder %s23, 2
      %s25 = scalar_select %p24, 0, %s23
      %s26 = sadd.s32 1, %s17
      %s27 = scalar_select %p24, %s26, %s17
      %p28 = scmp.ge.s32.totalorder %s27, 2
      %s29 = scalar_select %p28, 0, %s27
      %s30 = ssub.s32 %s17, %s29
      %s31 = ssub.s32 %s18, %s25
      %s32 = sor.u32 %s30, %s31
      %p33 = scmp.eq.s32.totalorder %s32, 0
      %s35 = sadd.s32 %s34, 1
      %s36 = scalar_select %p33, %s34, %s35
      %p39 = pneg %p33
      %p40 = scmp.eq.s32.totalorder %s10, 3
      %p41 = por %p39, %p40
      %p42 = scmp.ne.s32.totalorder %s34, %s37
      %p43 = scmp.eq.s32.totalorder %s10, 0
      %p44 = por %p42, %p43
      %p45 = scmp.ne.s32.totalorder %s34, %s37
      %p46 = scmp.eq.s32.totalorder %s15, 3
      %p47 = por %p45, %p46
      %p48 = scmp.ne.s32.totalorder %s37, %s38
      %p49 = scmp.eq.s32.totalorder %s15, 0
      %p50 = por %p48, %p49
      %p51 = scmp.ne.s32.totalorder %s37, %s38
      %p52 = scmp.eq.s32.totalorder %s16, 3
      %p53 = por %p51, %p52
      %p55 = scmp.ne.s32.totalorder %s38, %s54
      %p56 = scmp.eq.s32.totalorder %s16, 0
      %p57 = por %p55, %p56
      %s58 = ssub.s32 %s18, %s25
      %p59 = scmp.eq.s32.totalorder %s58, 0
      %s61 = sadd.s32 %s60, 1
      %s62 = scalar_select %p59, %s60, %s61
      %p65 = pneg %p59
      %p66 = scmp.eq.s32.totalorder %s10, 3
      %p67 = por %p65, %p66
      %p68 = scmp.ne.s32.totalorder %s60, %s63
      %p69 = scmp.eq.s32.totalorder %s10, 0
      %p70 = por %p68, %p69
      %p71 = scmp.ne.s32.totalorder %s60, %s63
      %p72 = scmp.eq.s32.totalorder %s15, 3
      %p73 = por %p71, %p72
      %p74 = scmp.ne.s32.totalorder %s63, %s64
      %p75 = scmp.eq.s32.totalorder %s15, 0
      %p76 = por %p74, %p75
      %p77 = scmp.ne.s32.totalorder %s63, %s64
      %p78 = scmp.eq.s32.totalorder %s16, 3
      %p79 = por %p77, %p78
      %p81 = scmp.ne.s32.totalorder %s64, %s80
      %p82 = scmp.eq.s32.totalorder %s16, 0
      %p83 = por %p81, %p82
      %s84 = ssub.s32 %s17, %s29
      %p85 = scmp.eq.s32.totalorder %s84, 0
      %s87 = sadd.s32 %s86, 1
      %s88 = scalar_select %p85, %s86, %s87
      %p91 = pneg %p85
      %p92 = scmp.eq.s32.totalorder %s10, 3
      %p93 = por %p91, %p92
      %p94 = scmp.ne.s32.totalorder %s86, %s89
      %p95 = scmp.eq.s32.totalorder %s10, 0
      %p96 = por %p94, %p95
      %p97 = scmp.ne.s32.totalorder %s86, %s89
      %p98 = scmp.eq.s32.totalorder %s15, 3
      %p99 = por %p97, %p98
      %p100 = scmp.ne.s32.totalorder %s89, %s90
      %p101 = scmp.eq.s32.totalorder %s15, 0
      %p102 = por %p100, %p101
      %p103 = scmp.ne.s32.totalorder %s89, %s90
      %p104 = scmp.eq.s32.totalorder %s16, 3
      %p105 = por %p103, %p104
      %p107 = scmp.ne.s32.totalorder %s90, %s106
      %p108 = scmp.eq.s32.totalorder %s16, 0
      %p109 = por %p107, %p108
      %s110 = ssub.s32 %s17, %s29
      %p111 = scmp.eq.s32.totalorder %s110, 0
      %s113 = sadd.s32 %s112, 1
      %s114 = scalar_select %p111, %s112, %s113
      %p117 = pneg %p111
      %p118 = scmp.eq.s32.totalorder %s10, 3
      %p119 = por %p117, %p118
      %p120 = scmp.ne.s32.totalorder %s112, %s115
      %p121 = scmp.eq.s32.totalorder %s10, 0
      %p122 = por %p120, %p121
      %p123 = scmp.ne.s32.totalorder %s112, %s115
      %p124 = scmp.eq.s32.totalorder %s15, 3
      %p125 = por %p123, %p124
      %p126 = scmp.ne.s32.totalorder %s115, %s116
      %p127 = scmp.eq.s32.totalorder %s15, 0
      %p128 = por %p126, %p127
      %p129 = scmp.ne.s32.totalorder %s115, %s116
      %p130 = scmp.eq.s32.totalorder %s16, 3
      %p131 = por %p129, %p130
      %p133 = scmp.ne.s32.totalorder %s116, %s132
      %p134 = scmp.eq.s32.totalorder %s16, 0
      %p135 = por %p133, %p134
      %s136 = ssub.s32 %s17, %s29
      %p137 = scmp.eq.s32.totalorder %s136, 0
      %s139 = sadd.s32 %s138, 1
      %s140 = scalar_select %p137, %s138, %s139
      %p143 = pneg %p137
      %p144 = scmp.eq.s32.totalorder %s10, 3
      %p145 = por %p143, %p144
      %p146 = scmp.ne.s32.totalorder %s138, %s141
      %p147 = scmp.eq.s32.totalorder %s10, 0
      %p148 = por %p146, %p147
      %p149 = scmp.ne.s32.totalorder %s138, %s141
      %p150 = scmp.eq.s32.totalorder %s15, 3
      %p151 = por %p149, %p150
      %p152 = scmp.ne.s32.totalorder %s141, %s142
      %p153 = scmp.eq.s32.totalorder %s15, 0
      %p154 = por %p152, %p153
      %p155 = scmp.ne.s32.totalorder %s141, %s142
      %p156 = scmp.eq.s32.totalorder %s16, 3
      %p157 = por %p155, %p156
      %p159 = scmp.ne.s32.totalorder %s142, %s158
      %p160 = scmp.eq.s32.totalorder %s16, 0
      %p161 = por %p159, %p160
      %p162 = scmp.le.s32.totalorder 1, %s10
      %p163 = scmp.lt.s32.totalorder %s10, 5
      %p164 = pnand %p162, %p163
      %p165 = pneg %p164
      // Predicated region
      $region9: #{graphsage_forward.7} parent=5 // pred_check
        _
      $region10: #{graphsage_forward.7} parent=5 // pred_check_branch
        %167 = sbr.rel (%p164) target = $region12
      $region11: #{graphsage_forward.7} parent=5 // pred_region
        %s168 = ssub.s32 %s10, 1
      $region12: #{graphsage_forward.7} parent=5 // pred_fallthru
        _
      %p169 = scmp.lt.s32.totalorder %s10, 4
      // Predicated region
      $region13: #{graphsage_forward.7} parent=5 // pred_check
        %p170 = pneg %p169
      $region14: #{graphsage_forward.7} parent=5 // pred_check_branch
        %172 = sbr.rel (%p170) target = $region16
      $region15: #{graphsage_forward.7} parent=5 // pred_region
        // Predicated region
        $region17: #{graphsage_forward.7} parent=15 // pred_check
          %p173 = pneg %p44
        $region18: #{graphsage_forward.7} parent=15 // pred_check_branch
          %175 = sbr.rel (%p173) target = $region20
        $region19: #{graphsage_forward.7} parent=15 // pred_region
          %s176 = sand.u32 %s34, 1
          %s177 = sand.u32 %s34, 1
          %s178 = smul.addr %s177, 128
          %s179 = scalar_lea.vmem [#allocation3], %s178
          %s180 = smul.u32 16, %s17
          %s181 = smul.addr %s180, 2
          %s182 = sadd.s32 %s18, %s181
          %s183 = smul.addr %s182, 8
          %s184 = scalar_lea.vmem %s0, %s183
          // Predicated region
          $region21: #{graphsage_forward.7} parent=19 // pred_check
            _
          $region22: #{graphsage_forward.7} parent=19 // pred_check_branch
            %186 = sbr.rel (0) target = $region24
          $region23: #{graphsage_forward.7} parent=19 // pred_region
            // Predicated region
            $region25: #{graphsage_forward.7} parent=23 // pred_check
              _
            $region26: #{graphsage_forward.7} parent=23 // pred_check_branch
              %188 = sbr.rel (0) target = $region28
            $region27: #{graphsage_forward.7} parent=23 // pred_region
              // Predicated region
              $region40: #{graphsage_forward.7} parent=27 // pred_check
                _
              $region41: #{graphsage_forward.7} parent=27 // pred_check_branch
                %234 = sbr.rel (0) target = $region43
              $region42: #{graphsage_forward.7} parent=27 // pred_region
                loop: start=0, step=1, limit=1
                $region44: #{graphsage_forward.7} parent=42 // loop_pre_header
                  _
                $region45: #{graphsage_forward.7} parent=42 // loop_header
                  %s236 = sphi 0, %s240
                  %p237 = scmp.ge.s32.totalorder %s236, 1
                  %s241 = sphi %s184, %s184
                  %s242 = sphi %s179, %s179
                $region46: #{graphsage_forward.7} parent=42 // loop_header_branch
                  %239 = sbr.rel (%p237) target = $region50
                $region47: #{graphsage_forward.7} parent=42 // loop_body
                  %v243 = vld [vmem:[%s241] sm:$0xff]
                  %244 = vst [vmem:[%s242] sm:$0xff] %v243
                  %v245 = vld [vmem:[%s241 + $0x10] sm:$0xff]
                  %246 = vst [vmem:[%s242 + $0x8] sm:$0xff] %v245
                  %v247 = vld [vmem:[%s241 + $0x20] sm:$0xff]
                  %248 = vst [vmem:[%s242 + $0x10] sm:$0xff] %v247
                  %v249 = vld [vmem:[%s241 + $0x30] sm:$0xff]
                  %250 = vst [vmem:[%s242 + $0x18] sm:$0xff] %v249
                  %v251 = vld [vmem:[%s241 + $0x40] sm:$0xff]
                  %252 = vst [vmem:[%s242 + $0x20] sm:$0xff] %v251
                  %v253 = vld [vmem:[%s241 + $0x50] sm:$0xff]
                  %254 = vst [vmem:[%s242 + $0x28] sm:$0xff] %v253
                  %v255 = vld [vmem:[%s241 + $0x60] sm:$0xff]
                  %256 = vst [vmem:[%s242 + $0x30] sm:$0xff] %v255
                  %v257 = vld [vmem:[%s241 + $0x70] sm:$0xff]
                  %258 = vst [vmem:[%s242 + $0x38] sm:$0xff] %v257
                  %v259 = vld [vmem:[%s241 + $0x80] sm:$0xff]
                  %260 = vst [vmem:[%s242 + $0x40] sm:$0xff] %v259
                  %v261 = vld [vmem:[%s241 + $0x90] sm:$0xff]
                  %262 = vst [vmem:[%s242 + $0x48] sm:$0xff] %v261
                  %v263 = vld [vmem:[%s241 + $0xa0] sm:$0xff]
                  %264 = vst [vmem:[%s242 + $0x50] sm:$0xff] %v263
                  %v265 = vld [vmem:[%s241 + $0xb0] sm:$0xff]
                  %266 = vst [vmem:[%s242 + $0x58] sm:$0xff] %v265
                  %v267 = vld [vmem:[%s241 + $0xc0] sm:$0xff]
                  %268 = vst [vmem:[%s242 + $0x60] sm:$0xff] %v267
                  %v269 = vld [vmem:[%s241 + $0xd0] sm:$0xff]
                  %270 = vst [vmem:[%s242 + $0x68] sm:$0xff] %v269
                  %v271 = vld [vmem:[%s241 + $0xe0] sm:$0xff]
                  %272 = vst [vmem:[%s242 + $0x70] sm:$0xff] %v271
                  %v273 = vld [vmem:[%s241 + $0xf0] sm:$0xff]
                  %274 = vst [vmem:[%s242 + $0x78] sm:$0xff] %v273
                $region48: #{graphsage_forward.7} parent=42 // loop_footer
                  %s240 = sadd.s32 1, %s236
                $region49: #{graphsage_forward.7} parent=42 // loop_footer_branch
                  %235 = sbr.rel target = $region45
                $region50: #{graphsage_forward.7} parent=42 // loop_exit
                  _
              $region43: #{graphsage_forward.7} parent=27 // pred_fallthru
                _
              // Predicated region
              $region51: #{graphsage_forward.7} parent=27 // pred_check
                _
              $region52: #{graphsage_forward.7} parent=27 // pred_check_branch
                %276 = sbr.rel target = $region54
              $region53: #{graphsage_forward.7} parent=27 // pred_region
                _
              $region54: #{graphsage_forward.7} parent=27 // pred_fallthru
                _
            $region28: #{graphsage_forward.7} parent=23 // pred_fallthru
              _
            // Predicated region
            $region29: #{graphsage_forward.7} parent=23 // pred_check
              _
            $region30: #{graphsage_forward.7} parent=23 // pred_check_branch
              %190 = sbr.rel target = $region32
            $region31: #{graphsage_forward.7} parent=23 // pred_region
              %s192 = ssub.s32 256, 1
              loop: start=0, step=1, limit=1
              $region33: #{graphsage_forward.7} parent=31 // loop_pre_header
                _
              $region34: #{graphsage_forward.7} parent=31 // loop_header
                %s194 = sphi 0, %s198
                %p195 = scmp.ge.s32.totalorder %s194, 1
                %s199 = sphi %s184, %s184
                %s200 = sphi %s179, %s179
              $region35: #{graphsage_forward.7} parent=31 // loop_header_branch
                %197 = sbr.rel (%p195) target = $region39
              $region36: #{graphsage_forward.7} parent=31 // loop_body
                %v201 = vld [vmem:[%s199] sm:%s192]
                %202 = vst [vmem:[%s200] sm:%s192] %v201
                %v203 = vld [vmem:[%s199 + $0x10] sm:%s192]
                %204 = vst [vmem:[%s200 + $0x8] sm:%s192] %v203
                %v205 = vld [vmem:[%s199 + $0x20] sm:%s192]
                %206 = vst [vmem:[%s200 + $0x10] sm:%s192] %v205
                %v207 = vld [vmem:[%s199 + $0x30] sm:%s192]
                %208 = vst [vmem:[%s200 + $0x18] sm:%s192] %v207
                %v209 = vld [vmem:[%s199 + $0x40] sm:%s192]
                %210 = vst [vmem:[%s200 + $0x20] sm:%s192] %v209
                %v211 = vld [vmem:[%s199 + $0x50] sm:%s192]
                %212 = vst [vmem:[%s200 + $0x28] sm:%s192] %v211
                %v213 = vld [vmem:[%s199 + $0x60] sm:%s192]
                %214 = vst [vmem:[%s200 + $0x30] sm:%s192] %v213
                %v215 = vld [vmem:[%s199 + $0x70] sm:%s192]
                %216 = vst [vmem:[%s200 + $0x38] sm:%s192] %v215
                %v217 = vld [vmem:[%s199 + $0x80] sm:%s192]
                %218 = vst [vmem:[%s200 + $0x40] sm:%s192] %v217
                %v219 = vld [vmem:[%s199 + $0x90] sm:%s192]
                %220 = vst [vmem:[%s200 + $0x48] sm:%s192] %v219
                %v221 = vld [vmem:[%s199 + $0xa0] sm:%s192]
                %222 = vst [vmem:[%s200 + $0x50] sm:%s192] %v221
                %v223 = vld [vmem:[%s199 + $0xb0] sm:%s192]
                %224 = vst [vmem:[%s200 + $0x58] sm:%s192] %v223
                %v225 = vld [vmem:[%s199 + $0xc0] sm:%s192]
                %226 = vst [vmem:[%s200 + $0x60] sm:%s192] %v225
                %v227 = vld [vmem:[%s199 + $0xd0] sm:%s192]
                %228 = vst [vmem:[%s200 + $0x68] sm:%s192] %v227
                %v229 = vld [vmem:[%s199 + $0xe0] sm:%s192]
                %230 = vst [vmem:[%s200 + $0x70] sm:%s192] %v229
                %v231 = vld [vmem:[%s199 + $0xf0] sm:%s192]
                %232 = vst [vmem:[%s200 + $0x78] sm:%s192] %v231
              $region37: #{graphsage_forward.7} parent=31 // loop_footer
                %s198 = sadd.s32 1, %s194
              $region38: #{graphsage_forward.7} parent=31 // loop_footer_branch
                %193 = sbr.rel target = $region34
              $region39: #{graphsage_forward.7} parent=31 // loop_exit
                _
            $region32: #{graphsage_forward.7} parent=23 // pred_fallthru
              _
          $region24: #{graphsage_forward.7} parent=19 // pred_fallthru
            _
          %277 = vnop
        $region20: #{graphsage_forward.7} parent=15 // pred_fallthru
          _
        // Predicated region
        $region55: #{graphsage_forward.7} parent=15 // pred_check
          %p278 = pneg %p70
        $region56: #{graphsage_forward.7} parent=15 // pred_check_branch
          %280 = sbr.rel (%p278) target = $region58
        $region57: #{graphsage_forward.7} parent=15 // pred_region
          %s281 = smul.u32 16, %s18
          %p282 = scmp.lt.s32.totalorder %s281, 31
          %s283 = scalar_select %p282, %s281, 31
          %s284 = smul.addr %s283, 8
          %s285 = scalar_lea.vmem %s1, %s284
          %s286 = smul.u32 16, %s18
        $region58: #{graphsage_forward.7} parent=15 // pred_fallthru
          _
        // Predicated region
        $region59: #{graphsage_forward.7} parent=15 // pred_check
          %p287 = pneg %p96
        $region60: #{graphsage_forward.7} parent=15 // pred_check_branch
          %289 = sbr.rel (%p287) target = $region62
        $region61: #{graphsage_forward.7} parent=15 // pred_region
          %s290 = smul.u32 16, %s17
          %p291 = scmp.lt.s32.totalorder %s290, 31
          %s292 = scalar_select %p291, %s290, 31
          %s293 = smul.addr %s292, 8
          %s294 = scalar_lea.vmem %s2, %s293
          %s295 = smul.u32 16, %s17
        $region62: #{graphsage_forward.7} parent=15 // pred_fallthru
          _
        // Predicated region
        $region63: #{graphsage_forward.7} parent=15 // pred_check
          %p296 = pneg %p122
        $region64: #{graphsage_forward.7} parent=15 // pred_check_branch
          %298 = sbr.rel (%p296) target = $region66
        $region65: #{graphsage_forward.7} parent=15 // pred_region
          %s299 = smul.u32 16, %s17
          %p300 = scmp.lt.s32.totalorder %s299, 31
          %s301 = scalar_select %p300, %s299, 31
          %s302 = smul.addr %s301, 8
          %s303 = scalar_lea.vmem %s3, %s302
          %s304 = smul.u32 16, %s17
        $region66: #{graphsage_forward.7} parent=15 // pred_fallthru
          _
      $region16: #{graphsage_forward.7} parent=5 // pred_fallthru
        _
      %p305 = scmp.le.s32.totalorder 1, %s10
      %p306 = scmp.lt.s32.totalorder %s10, 5
      %p307 = pnand %p305, %p306
      %p308 = pneg %p307
      // Predicated region
      $region67: #{graphsage_forward.7} parent=5 // pred_check
        _
      $region68: #{graphsage_forward.7} parent=5 // pred_check_branch
        %310 = sbr.rel (%p307) target = $region70
      $region69: #{graphsage_forward.7} parent=5 // pred_region
        %s311 = ssub.s32 %s10, 1
        %s312 = sand.u32 %s37, 1
        %s313 = sand.u32 %s37, 1
        %s314 = smul.addr %s313, 128
        %s315 = scalar_lea.vmem [#allocation3], %s314
        // Predicated region
        $region71: #{graphsage_forward.7} parent=69 // pred_check
          %p316 = pneg %p50
        $region72: #{graphsage_forward.7} parent=69 // pred_check_branch
          %318 = sbr.rel (%p316) target = $region74
        $region73: #{graphsage_forward.7} parent=69 // pred_region
          _
        $region74: #{graphsage_forward.7} parent=69 // pred_fallthru
          _
        %s319 = sand.u32 %s37, 1
        %s320 = sand.u32 %s37, 1
        %s321 = smul.addr %s320, 128
        %s322 = scalar_lea.vmem [#allocation3], %s321
        %p323 = pneg %p50
        %p324 = pneg %p47
        %s325 = smul.u32 16, %s20
        %p326 = scmp.lt.s32.totalorder %s325, 31
        %s327 = scalar_select %p326, %s325, 31
        %s328 = smul.addr %s327, 8
        %s329 = scalar_lea.vmem %s1, %s328
        %p330 = pneg %p76
        %p331 = pneg %p73
        %s332 = smul.u32 16, %s19
        %p333 = scmp.lt.s32.totalorder %s332, 31
        %s334 = scalar_select %p333, %s332, 31
        %s335 = smul.addr %s334, 8
        %s336 = scalar_lea.vmem %s2, %s335
        %p337 = pneg %p102
        %p338 = pneg %p99
        %s339 = smul.u32 16, %s19
        %p340 = scmp.lt.s32.totalorder %s339, 31
        %s341 = scalar_select %p340, %s339, 31
        %s342 = smul.addr %s341, 8
        %s343 = scalar_lea.vmem %s3, %s342
        %p344 = pneg %p128
        %p345 = pneg %p125
        %p346 = pneg %p154
        %p347 = pneg %p151
        %s348 = smul.u32 16, %s19
        %p349 = scmp.lt.s32.totalorder %s348, 31
        %s350 = scalar_select %p349, %s348, 31
        %s351 = smul.addr %s350, 8
        %s352 = scalar_lea.vmem %s4, %s351
        %s353 = smul.u32 16, %s19
        %s354 = smul.u32 16, %s20
        %p355 = scmp.lt.s32.totalorder %s354, 31
        %s356 = scalar_select %p355, %s354, 31
        %s357 = smul.addr %s356, 8
        %s358 = scalar_lea.vmem %s1, %s357
        %s359 = smul.u32 16, %s20
        %s360 = smul.u32 16, %s19
        %p361 = scmp.lt.s32.totalorder %s360, 31
        %s362 = scalar_select %p361, %s360, 31
        %s363 = smul.addr %s362, 8
        %s364 = scalar_lea.vmem %s2, %s363
        %s365 = smul.u32 16, %s19
        %s366 = smul.u32 16, %s19
        %p367 = scmp.lt.s32.totalorder %s366, 31
        %s368 = scalar_select %p367, %s366, 31
        %s369 = smul.addr %s368, 8
        %s370 = scalar_lea.vmem %s3, %s369
        %s371 = smul.u32 16, %s19
        %s372 = smul.u32 16, %s19
        %p373 = scmp.lt.s32.totalorder %s372, 31
        %s374 = scalar_select %p373, %s372, 31
        %s375 = smul.addr %s374, 8
        %s376 = scalar_lea.vmem %s4, %s375
        %s377 = smul.u32 16, %s19
        %p378 = scmp.eq.s32.totalorder %s20, 0
        // Predicated region
        $region75: #{graphsage_forward.7} parent=69 // pred_check
          %p379 = pneg %p378
        $region76: #{graphsage_forward.7} parent=69 // pred_check_branch
          %381 = sbr.rel (%p379) target = $region78
        $region77: #{graphsage_forward.7} parent=69 // pred_region
          %382 = vst [vmem:[#allocation2] sm:$0xff] 0.0
          %383 = vst [vmem:[#allocation2 + $0x8] sm:$0xff] 0.0
          %384 = vst [vmem:[#allocation2 + $0x10] sm:$0xff] 0.0
          %385 = vst [vmem:[#allocation2 + $0x18] sm:$0xff] 0.0
          %386 = vst [vmem:[#allocation2 + $0x20] sm:$0xff] 0.0
          %387 = vst [vmem:[#allocation2 + $0x28] sm:$0xff] 0.0
          %388 = vst [vmem:[#allocation2 + $0x30] sm:$0xff] 0.0
          %389 = vst [vmem:[#allocation2 + $0x38] sm:$0xff] 0.0
          %390 = vst [vmem:[#allocation2 + $0x40] sm:$0xff] 0.0
          %391 = vst [vmem:[#allocation2 + $0x48] sm:$0xff] 0.0
          %392 = vst [vmem:[#allocation2 + $0x50] sm:$0xff] 0.0
          %393 = vst [vmem:[#allocation2 + $0x58] sm:$0xff] 0.0
          %394 = vst [vmem:[#allocation2 + $0x60] sm:$0xff] 0.0
          %395 = vst [vmem:[#allocation2 + $0x68] sm:$0xff] 0.0
          %396 = vst [vmem:[#allocation2 + $0x70] sm:$0xff] 0.0
          %397 = vst [vmem:[#allocation2 + $0x78] sm:$0xff] 0.0
        $region78: #{graphsage_forward.7} parent=69 // pred_fallthru
          _
        %v398 = vld [vmem:[%s358] sm:$0xff]
        %v399 = vld [vmem:[%s358 + $0x8] sm:$0xff]
        %v400 = vld [vmem:[%s358 + $0x10] sm:$0xff]
        %v401 = vld [vmem:[%s358 + $0x18] sm:$0xff]
        %v402 = vld [vmem:[%s358 + $0x20] sm:$0xff]
        %v403 = vld [vmem:[%s358 + $0x28] sm:$0xff]
        %v404 = vld [vmem:[%s358 + $0x30] sm:$0xff]
        %v405 = vld [vmem:[%s358 + $0x38] sm:$0xff]
        %v406 = vld [vmem:[%s358 + $0x40] sm:$0xff]
        %v407 = vld [vmem:[%s358 + $0x48] sm:$0xff]
        %v408 = vld [vmem:[%s358 + $0x50] sm:$0xff]
        %v409 = vld [vmem:[%s358 + $0x58] sm:$0xff]
        %v410 = vld [vmem:[%s358 + $0x60] sm:$0xff]
        %v411 = vld [vmem:[%s358 + $0x68] sm:$0xff]
        %v412 = vld [vmem:[%s358 + $0x70] sm:$0xff]
        %v413 = vld [vmem:[%s358 + $0x78] sm:$0xff]
        %v414 = vld [vmem:[#allocation2] sm:$0xff]
        %v415 = vld [vmem:[#allocation2 + $0x8] sm:$0xff]
        %v416 = vld [vmem:[#allocation2 + $0x10] sm:$0xff]
        %v417 = vld [vmem:[#allocation2 + $0x18] sm:$0xff]
        %v418 = vld [vmem:[#allocation2 + $0x20] sm:$0xff]
        %v419 = vld [vmem:[#allocation2 + $0x28] sm:$0xff]
        %v420 = vld [vmem:[#allocation2 + $0x30] sm:$0xff]
        %v421 = vld [vmem:[#allocation2 + $0x38] sm:$0xff]
        %v422 = vld [vmem:[#allocation2 + $0x40] sm:$0xff]
        %v423 = vld [vmem:[#allocation2 + $0x48] sm:$0xff]
        %v424 = vld [vmem:[#allocation2 + $0x50] sm:$0xff]
        %v425 = vld [vmem:[#allocation2 + $0x58] sm:$0xff]
        %v426 = vld [vmem:[#allocation2 + $0x60] sm:$0xff]
        %v427 = vld [vmem:[#allocation2 + $0x68] sm:$0xff]
        %v428 = vld [vmem:[#allocation2 + $0x70] sm:$0xff]
        %v429 = vld [vmem:[#allocation2 + $0x78] sm:$0xff]
        %v430 = vld [vmem:[%s315] sm:$0xff]
        %v431 = vld [vmem:[%s315 + $0x8] sm:$0xff]
        %v432 = vld [vmem:[%s315 + $0x10] sm:$0xff]
        %v433 = vld [vmem:[%s315 + $0x18] sm:$0xff]
        %v434 = vld [vmem:[%s315 + $0x20] sm:$0xff]
        %v435 = vld [vmem:[%s315 + $0x28] sm:$0xff]
        %v436 = vld [vmem:[%s315 + $0x30] sm:$0xff]
        %v437 = vld [vmem:[%s315 + $0x38] sm:$0xff]
        %v438 = vld [vmem:[%s315 + $0x40] sm:$0xff]
        %v439 = vld [vmem:[%s315 + $0x48] sm:$0xff]
        %v440 = vld [vmem:[%s315 + $0x50] sm:$0xff]
        %v441 = vld [vmem:[%s315 + $0x58] sm:$0xff]
        %v442 = vld [vmem:[%s315 + $0x60] sm:$0xff]
        %v443 = vld [vmem:[%s315 + $0x68] sm:$0xff]
        %v444 = vld [vmem:[%s315 + $0x70] sm:$0xff]
        %v445 = vld [vmem:[%s315 + $0x78] sm:$0xff]
        %446 = vmatprep.subr.mxu0 0.0
        %447 = vmatpush1.msra.mxu0 %v413
        %448 = vmatprep.subr.mxu0 0.0
        %449 = vmatpush1.msra.mxu0 %v412
        %450 = vmatprep.subr.mxu0 0.0
        %451 = vmatpush1.msra.mxu0 %v411
        %452 = vmatprep.subr.mxu0 0.0
        %453 = vmatpush1.msra.mxu0 %v410
        %454 = vmatprep.subr.mxu0 0.0
        %455 = vmatpush1.msra.mxu0 %v409
        %456 = vmatprep.subr.mxu0 0.0
        %457 = vmatpush1.msra.mxu0 %v408
        %458 = vmatprep.subr.mxu0 0.0
        %459 = vmatpush1.msra.mxu0 %v407
        %460 = vmatprep.subr.mxu0 0.0
        %461 = vmatpush1.msra.mxu0 %v406
        %462 = vmatprep.subr.mxu0 0.0
        %463 = vmatpush1.msra.mxu0 %v405
        %464 = vmatprep.subr.mxu0 0.0
        %465 = vmatpush1.msra.mxu0 %v404
        %466 = vmatprep.subr.mxu0 0.0
        %467 = vmatpush1.msra.mxu0 %v403
        %468 = vmatprep.subr.mxu0 0.0
        %469 = vmatpush1.msra.mxu0 %v402
        %470 = vmatprep.subr.mxu0 0.0
        %471 = vmatpush1.msra.mxu0 %v401
        %472 = vmatprep.subr.mxu0 0.0
        %473 = vmatpush1.msra.mxu0 %v400
        %474 = vmatprep.subr.mxu0 0.0
        %475 = vmatpush1.msra.mxu0 %v399
        %476 = vmatprep.subr.mxu0 0.0
        %477 = vmatpush1.msra.mxu0 %v398
        %478 = vmatprep.subr.mxu0 0.0
        %479 = vmatpush2.msra.mxu0 0.0
        %480 = vmatprep.subr.mxu0 0.0
        %481 = vmatpush2.msra.mxu0 0.0
        %482 = vmatprep.subr.mxu0 0.0
        %483 = vmatpush2.msra.mxu0 0.0
        %484 = vmatprep.subr.mxu0 0.0
        %485 = vmatpush2.msra.mxu0 0.0
        %486 = vmatprep.subr.mxu0 0.0
        %487 = vmatpush2.msra.mxu0 0.0
        %488 = vmatprep.subr.mxu0 0.0
        %489 = vmatpush2.msra.mxu0 0.0
        %490 = vmatprep.subr.mxu0 0.0
        %491 = vmatpush2.msra.mxu0 0.0
        %492 = vmatprep.subr.mxu0 0.0
        %493 = vmatpush2.msra.mxu0 0.0
        %494 = vmatprep.subr.mxu0 0.0
        %495 = vmatpush2.msra.mxu0 0.0
        %496 = vmatprep.subr.mxu0 0.0
        %497 = vmatpush2.msra.mxu0 0.0
        %498 = vmatprep.subr.mxu0 0.0
        %499 = vmatpush2.msra.mxu0 0.0
        %500 = vmatprep.subr.mxu0 0.0
        %501 = vmatpush2.msra.mxu0 0.0
        %502 = vmatprep.subr.mxu0 0.0
        %503 = vmatpush2.msra.mxu0 0.0
        %504 = vmatprep.subr.mxu0 0.0
        %505 = vmatpush2.msra.mxu0 0.0
        %506 = vmatprep.subr.mxu0 0.0
        %507 = vmatpush2.msra.mxu0 0.0
        %508 = vmatprep.subr.mxu0 0.0
        %509 = vmatpush2.msra.mxu0 0.0
        %510 = vmatprep.mubr.f32.mxu0 0.0
        %511 = vmatmul.mubr.f32.gmra.mxu0 %v430
        %v512 = vpop.f32.mrf.mxu0
        %v513 = vadd.f32 0.0, %v512
        %v514 = vpop.f32.mrf.mxu0
        %515 = vmatprep.mubr.f32.mxu0 0.0
        %516 = vmatmul.mubr.f32.gmra.mxu0 %v431
        %v517 = vpop.f32.mrf.mxu0
        %v518 = vadd.f32 0.0, %v517
        %v519 = vpop.f32.mrf.mxu0
        %520 = vmatprep.mubr.f32.mxu0 0.0
        %521 = vmatmul.mubr.f32.gmra.mxu0 %v432
        %v522 = vpop.f32.mrf.mxu0
        %v523 = vadd.f32 0.0, %v522
        %v524 = vpop.f32.mrf.mxu0
        %525 = vmatprep.mubr.f32.mxu0 0.0
        %526 = vmatmul.mubr.f32.gmra.mxu0 %v433
        %v527 = vpop.f32.mrf.mxu0
        %v528 = vadd.f32 0.0, %v527
        %v529 = vpop.f32.mrf.mxu0
        %530 = vmatprep.mubr.f32.mxu0 0.0
        %531 = vmatmul.mubr.f32.gmra.mxu0 %v434
        %v532 = vpop.f32.mrf.mxu0
        %v533 = vadd.f32 0.0, %v532
        %v534 = vpop.f32.mrf.mxu0
        %535 = vmatprep.mubr.f32.mxu0 0.0
        %536 = vmatmul.mubr.f32.gmra.mxu0 %v435
        %v537 = vpop.f32.mrf.mxu0
        %v538 = vadd.f32 0.0, %v537
        %v539 = vpop.f32.mrf.mxu0
        %540 = vmatprep.mubr.f32.mxu0 0.0
        %541 = vmatmul.mubr.f32.gmra.mxu0 %v436
        %v542 = vpop.f32.mrf.mxu0
        %v543 = vadd.f32 0.0, %v542
        %v544 = vpop.f32.mrf.mxu0
        %545 = vmatprep.mubr.f32.mxu0 0.0
        %546 = vmatmul.mubr.f32.gmra.mxu0 %v437
        %v547 = vpop.f32.mrf.mxu0
        %v548 = vadd.f32 0.0, %v547
        %v549 = vpop.f32.mrf.mxu0
        %550 = vmatprep.mubr.f32.mxu0 0.0
        %551 = vmatmul.mubr.f32.gmra.mxu0 %v438
        %v552 = vpop.f32.mrf.mxu0
        %v553 = vadd.f32 0.0, %v552
        %v554 = vpop.f32.mrf.mxu0
        %555 = vmatprep.mubr.f32.mxu0 0.0
        %556 = vmatmul.mubr.f32.gmra.mxu0 %v439
        %v557 = vpop.f32.mrf.mxu0
        %v558 = vadd.f32 0.0, %v557
        %v559 = vpop.f32.mrf.mxu0
        %560 = vmatprep.mubr.f32.mxu0 0.0
        %561 = vmatmul.mubr.f32.gmra.mxu0 %v440
        %v562 = vpop.f32.mrf.mxu0
        %v563 = vadd.f32 0.0, %v562
        %v564 = vpop.f32.mrf.mxu0
        %565 = vmatprep.mubr.f32.mxu0 0.0
        %566 = vmatmul.mubr.f32.gmra.mxu0 %v441
        %v567 = vpop.f32.mrf.mxu0
        %v568 = vadd.f32 0.0, %v567
        %v569 = vpop.f32.mrf.mxu0
        %570 = vmatprep.mubr.f32.mxu0 0.0
        %571 = vmatmul.mubr.f32.gmra.mxu0 %v442
        %v572 = vpop.f32.mrf.mxu0
        %v573 = vadd.f32 0.0, %v572
        %v574 = vpop.f32.mrf.mxu0
        %575 = vmatprep.mubr.f32.mxu0 0.0
        %576 = vmatmul.mubr.f32.gmra.mxu0 %v443
        %v577 = vpop.f32.mrf.mxu0
        %v578 = vadd.f32 0.0, %v577
        %v579 = vpop.f32.mrf.mxu0
        %580 = vmatprep.mubr.f32.mxu0 0.0
        %581 = vmatmul.mubr.f32.gmra.mxu0 %v444
        %v582 = vpop.f32.mrf.mxu0
        %v583 = vadd.f32 0.0, %v582
        %v584 = vpop.f32.mrf.mxu0
        %585 = vmatprep.mubr.f32.mxu0 0.0
        %586 = vmatmul.mubr.f32.gmra.mxu0 %v445
        %v587 = vpop.f32.mrf.mxu0
        %v588 = vadd.f32 0.0, %v587
        %v589 = vpop.f32.mrf.mxu0
        %590 = vdwg.mxu0
        %v591 = vadd.f32 %v414, %v513
        %v592 = vadd.f32 %v415, %v518
        %v593 = vadd.f32 %v416, %v523
        %v594 = vadd.f32 %v417, %v528
        %v595 = vadd.f32 %v418, %v533
        %v596 = vadd.f32 %v419, %v538
        %v597 = vadd.f32 %v420, %v543
        %v598 = vadd.f32 %v421, %v548
        %v599 = vadd.f32 %v422, %v553
        %v600 = vadd.f32 %v423, %v558
        %v601 = vadd.f32 %v424, %v563
        %v602 = vadd.f32 %v425, %v568
        %v603 = vadd.f32 %v426, %v573
        %v604 = vadd.f32 %v427, %v578
        %v605 = vadd.f32 %v428, %v583
        %v606 = vadd.f32 %v429, %v588
        %607 = vst [vmem:[#allocation2] sm:$0xff] %v591
        %608 = vst [vmem:[#allocation2 + $0x8] sm:$0xff] %v592
        %609 = vst [vmem:[#allocation2 + $0x10] sm:$0xff] %v593
        %610 = vst [vmem:[#allocation2 + $0x18] sm:$0xff] %v594
        %611 = vst [vmem:[#allocation2 + $0x20] sm:$0xff] %v595
        %612 = vst [vmem:[#allocation2 + $0x28] sm:$0xff] %v596
        %613 = vst [vmem:[#allocation2 + $0x30] sm:$0xff] %v597
        %614 = vst [vmem:[#allocation2 + $0x38] sm:$0xff] %v598
        %615 = vst [vmem:[#allocation2 + $0x40] sm:$0xff] %v599
        %616 = vst [vmem:[#allocation2 + $0x48] sm:$0xff] %v600
        %617 = vst [vmem:[#allocation2 + $0x50] sm:$0xff] %v601
        %618 = vst [vmem:[#allocation2 + $0x58] sm:$0xff] %v602
        %619 = vst [vmem:[#allocation2 + $0x60] sm:$0xff] %v603
        %620 = vst [vmem:[#allocation2 + $0x68] sm:$0xff] %v604
        %621 = vst [vmem:[#allocation2 + $0x70] sm:$0xff] %v605
        %622 = vst [vmem:[#allocation2 + $0x78] sm:$0xff] %v606
        %p623 = scmp.eq.s32.totalorder %s20, 1
        // Predicated region
        $region79: #{graphsage_forward.7} parent=69 // pred_check
          %p624 = pneg %p623
        $region80: #{graphsage_forward.7} parent=69 // pred_check_branch
          %626 = sbr.rel (%p624) target = $region82
        $region81: #{graphsage_forward.7} parent=69 // pred_region
          %v627 = vld [vmem:[#allocation2] sm:$0xff]
          %v628 = vld [vmem:[#allocation2 + $0x8] sm:$0xff]
          %v629 = vld [vmem:[#allocation2 + $0x10] sm:$0xff]
          %v630 = vld [vmem:[#allocation2 + $0x18] sm:$0xff]
          %v631 = vld [vmem:[#allocation2 + $0x20] sm:$0xff]
          %v632 = vld [vmem:[#allocation2 + $0x28] sm:$0xff]
          %v633 = vld [vmem:[#allocation2 + $0x30] sm:$0xff]
          %v634 = vld [vmem:[#allocation2 + $0x38] sm:$0xff]
          %v635 = vld [vmem:[#allocation2 + $0x40] sm:$0xff]
          %v636 = vld [vmem:[#allocation2 + $0x48] sm:$0xff]
          %v637 = vld [vmem:[#allocation2 + $0x50] sm:$0xff]
          %v638 = vld [vmem:[#allocation2 + $0x58] sm:$0xff]
          %v639 = vld [vmem:[#allocation2 + $0x60] sm:$0xff]
          %v640 = vld [vmem:[#allocation2 + $0x68] sm:$0xff]
          %v641 = vld [vmem:[#allocation2 + $0x70] sm:$0xff]
          %v642 = vld [vmem:[#allocation2 + $0x78] sm:$0xff]
          %v643 = vld [vmem:[%s364] sm:$0xff]
          %v644 = vld [vmem:[%s364 + $0x8] sm:$0xff]
          %v645 = vld [vmem:[%s364 + $0x10] sm:$0xff]
          %v646 = vld [vmem:[%s364 + $0x18] sm:$0xff]
          %v647 = vld [vmem:[%s364 + $0x20] sm:$0xff]
          %v648 = vld [vmem:[%s364 + $0x28] sm:$0xff]
          %v649 = vld [vmem:[%s364 + $0x30] sm:$0xff]
          %v650 = vld [vmem:[%s364 + $0x38] sm:$0xff]
          %v651 = vld [vmem:[%s364 + $0x40] sm:$0xff]
          %v652 = vld [vmem:[%s364 + $0x48] sm:$0xff]
          %v653 = vld [vmem:[%s364 + $0x50] sm:$0xff]
          %v654 = vld [vmem:[%s364 + $0x58] sm:$0xff]
          %v655 = vld [vmem:[%s364 + $0x60] sm:$0xff]
          %v656 = vld [vmem:[%s364 + $0x68] sm:$0xff]
          %v657 = vld [vmem:[%s364 + $0x70] sm:$0xff]
          %v658 = vld [vmem:[%s364 + $0x78] sm:$0xff]
          %660 = vset.pattern.permute.xlu0 0
          %661 = vperm.xlu0 %660, %v643
          %v662 = vpop.permute.xlu0 %661
          %665 = vset.pattern.permute.xlu0 0
          %666 = vperm.xlu0 %665, %v644
          %v667 = vpop.permute.xlu0 %666
          %670 = vset.pattern.permute.xlu0 0
          %671 = vperm.xlu0 %670, %v645
          %v672 = vpop.permute.xlu0 %671
          %675 = vset.pattern.permute.xlu0 0
          %676 = vperm.xlu0 %675, %v646
          %v677 = vpop.permute.xlu0 %676
          %680 = vset.pattern.permute.xlu0 0
          %681 = vperm.xlu0 %680, %v647
          %v682 = vpop.permute.xlu0 %681
          %685 = vset.pattern.permute.xlu0 0
          %686 = vperm.xlu0 %685, %v648
          %v687 = vpop.permute.xlu0 %686
          %690 = vset.pattern.permute.xlu0 0
          %691 = vperm.xlu0 %690, %v649
          %v692 = vpop.permute.xlu0 %691
          %695 = vset.pattern.permute.xlu0 0
          %696 = vperm.xlu0 %695, %v650
          %v697 = vpop.permute.xlu0 %696
          %700 = vset.pattern.permute.xlu0 0
          %701 = vperm.xlu0 %700, %v651
          %v702 = vpop.permute.xlu0 %701
          %705 = vset.pattern.permute.xlu0 0
          %706 = vperm.xlu0 %705, %v652
          %v707 = vpop.permute.xlu0 %706
          %710 = vset.pattern.permute.xlu0 0
          %711 = vperm.xlu0 %710, %v653
          %v712 = vpop.permute.xlu0 %711
          %715 = vset.pattern.permute.xlu0 0
          %716 = vperm.xlu0 %715, %v654
          %v717 = vpop.permute.xlu0 %716
          %720 = vset.pattern.permute.xlu0 0
          %721 = vperm.xlu0 %720, %v655
          %v722 = vpop.permute.xlu0 %721
          %725 = vset.pattern.permute.xlu0 0
          %726 = vperm.xlu0 %725, %v656
          %v727 = vpop.permute.xlu0 %726
          %730 = vset.pattern.permute.xlu0 0
          %731 = vperm.xlu0 %730, %v657
          %v732 = vpop.permute.xlu0 %731
          %735 = vset.pattern.permute.xlu0 0
          %736 = vperm.xlu0 %735, %v658
          %v737 = vpop.permute.xlu0 %736
          %v739 = vmul.f32 %v627, %v662
          %v740 = vmul.f32 %v628, %v667
          %v741 = vmul.f32 %v629, %v672
          %v742 = vmul.f32 %v630, %v677
          %v743 = vmul.f32 %v631, %v682
          %v744 = vmul.f32 %v632, %v687
          %v745 = vmul.f32 %v633, %v692
          %v746 = vmul.f32 %v634, %v697
          %v747 = vmul.f32 %v635, %v702
          %v748 = vmul.f32 %v636, %v707
          %v749 = vmul.f32 %v637, %v712
          %v750 = vmul.f32 %v638, %v717
          %v751 = vmul.f32 %v639, %v722
          %v752 = vmul.f32 %v640, %v727
          %v753 = vmul.f32 %v641, %v732
          %v754 = vmul.f32 %v642, %v737
          %v755 = vld [vmem:[%s370] sm:$0xff]
          %v756 = vld [vmem:[%s370 + $0x8] sm:$0xff]
          %v757 = vld [vmem:[%s370 + $0x10] sm:$0xff]
          %v758 = vld [vmem:[%s370 + $0x18] sm:$0xff]
          %v759 = vld [vmem:[%s370 + $0x20] sm:$0xff]
          %v760 = vld [vmem:[%s370 + $0x28] sm:$0xff]
          %v761 = vld [vmem:[%s370 + $0x30] sm:$0xff]
          %v762 = vld [vmem:[%s370 + $0x38] sm:$0xff]
          %v763 = vld [vmem:[%s370 + $0x40] sm:$0xff]
          %v764 = vld [vmem:[%s370 + $0x48] sm:$0xff]
          %v765 = vld [vmem:[%s370 + $0x50] sm:$0xff]
          %v766 = vld [vmem:[%s370 + $0x58] sm:$0xff]
          %v767 = vld [vmem:[%s370 + $0x60] sm:$0xff]
          %v768 = vld [vmem:[%s370 + $0x68] sm:$0xff]
          %v769 = vld [vmem:[%s370 + $0x70] sm:$0xff]
          %v770 = vld [vmem:[%s370 + $0x78] sm:$0xff]
          %v771 = vadd.f32 %v739, %v755
          %v772 = vadd.f32 %v740, %v756
          %v773 = vadd.f32 %v741, %v757
          %v774 = vadd.f32 %v742, %v758
          %v775 = vadd.f32 %v743, %v759
          %v776 = vadd.f32 %v744, %v760
          %v777 = vadd.f32 %v745, %v761
          %v778 = vadd.f32 %v746, %v762
          %v779 = vadd.f32 %v747, %v763
          %v780 = vadd.f32 %v748, %v764
          %v781 = vadd.f32 %v749, %v765
          %v782 = vadd.f32 %v750, %v766
          %v783 = vadd.f32 %v751, %v767
          %v784 = vadd.f32 %v752, %v768
          %v785 = vadd.f32 %v753, %v769
          %v786 = vadd.f32 %v754, %v770
          %v787 = vlaneseq
          %v788 = vand.u32 %v787, 127
          %vm789 = vcmp.lt.s32.totalorder %v788, 8
          %v790 = vsel %vm789, %v771, -1e+30
          %v791 = vsel %vm789, %v772, -1e+30
          %v792 = vsel %vm789, %v773, -1e+30
          %v793 = vsel %vm789, %v774, -1e+30
          %v794 = vsel %vm789, %v775, -1e+30
          %v795 = vsel %vm789, %v776, -1e+30
          %v796 = vsel %vm789, %v777, -1e+30
          %v797 = vsel %vm789, %v778, -1e+30
          %v798 = vsel %vm789, %v779, -1e+30
          %v799 = vsel %vm789, %v780, -1e+30
          %v800 = vsel %vm789, %v781, -1e+30
          %v801 = vsel %vm789, %v782, -1e+30
          %v802 = vsel %vm789, %v783, -1e+30
          %v803 = vsel %vm789, %v784, -1e+30
          %v804 = vsel %vm789, %v785, -1e+30
          %v805 = vsel %vm789, %v786, -1e+30
          %806 = vmax.xlane.f32.xlu0 %v790
          %v807 = vpop.xlane.xlu0 %806
          %808 = vmax.xlane.f32.xlu0 %v791
          %v809 = vpop.xlane.xlu0 %808
          %810 = vmax.xlane.f32.xlu0 %v792
          %v811 = vpop.xlane.xlu0 %810
          %812 = vmax.xlane.f32.xlu0 %v793
          %v813 = vpop.xlane.xlu0 %812
          %814 = vmax.xlane.f32.xlu0 %v794
          %v815 = vpop.xlane.xlu0 %814
          %816 = vmax.xlane.f32.xlu0 %v795
          %v817 = vpop.xlane.xlu0 %816
          %818 = vmax.xlane.f32.xlu0 %v796
          %v819 = vpop.xlane.xlu0 %818
          %820 = vmax.xlane.f32.xlu0 %v797
          %v821 = vpop.xlane.xlu0 %820
          %822 = vmax.xlane.f32.xlu0 %v798
          %v823 = vpop.xlane.xlu0 %822
          %824 = vmax.xlane.f32.xlu0 %v799
          %v825 = vpop.xlane.xlu0 %824
          %826 = vmax.xlane.f32.xlu0 %v800
          %v827 = vpop.xlane.xlu0 %826
          %828 = vmax.xlane.f32.xlu0 %v801
          %v829 = vpop.xlane.xlu0 %828
          %830 = vmax.xlane.f32.xlu0 %v802
          %v831 = vpop.xlane.xlu0 %830
          %832 = vmax.xlane.f32.xlu0 %v803
          %v833 = vpop.xlane.xlu0 %832
          %834 = vmax.xlane.f32.xlu0 %v804
          %v835 = vpop.xlane.xlu0 %834
          %836 = vmax.xlane.f32.xlu0 %v805
          %v837 = vpop.xlane.xlu0 %836
          %v838 = vsub.f32 %v790, %v807
          %v839 = vsub.f32 %v791, %v809
          %v840 = vsub.f32 %v792, %v811
          %v841 = vsub.f32 %v793, %v813
          %v842 = vsub.f32 %v794, %v815
          %v843 = vsub.f32 %v795, %v817
          %v844 = vsub.f32 %v796, %v819
          %v845 = vsub.f32 %v797, %v821
          %v846 = vsub.f32 %v798, %v823
          %v847 = vsub.f32 %v799, %v825
          %v848 = vsub.f32 %v800, %v827
          %v849 = vsub.f32 %v801, %v829
          %v850 = vsub.f32 %v802, %v831
          %v851 = vsub.f32 %v803, %v833
          %v852 = vsub.f32 %v804, %v835
          %v853 = vsub.f32 %v805, %v837
          %v854 = vmul.f32 %v838, 1.442695
          %v855 = vpow.pop %v854
          %v856 = vmul.f32 %v839, 1.442695
          %v857 = vpow.pop %v856
          %v858 = vmul.f32 %v840, 1.442695
          %v859 = vpow.pop %v858
          %v860 = vmul.f32 %v841, 1.442695
          %v861 = vpow.pop %v860
          %v862 = vmul.f32 %v842, 1.442695
          %v863 = vpow.pop %v862
          %v864 = vmul.f32 %v843, 1.442695
          %v865 = vpow.pop %v864
          %v866 = vmul.f32 %v844, 1.442695
          %v867 = vpow.pop %v866
          %v868 = vmul.f32 %v845, 1.442695
          %v869 = vpow.pop %v868
          %v870 = vmul.f32 %v846, 1.442695
          %v871 = vpow.pop %v870
          %v872 = vmul.f32 %v847, 1.442695
          %v873 = vpow.pop %v872
          %v874 = vmul.f32 %v848, 1.442695
          %v875 = vpow.pop %v874
          %v876 = vmul.f32 %v849, 1.442695
          %v877 = vpow.pop %v876
          %v878 = vmul.f32 %v850, 1.442695
          %v879 = vpow.pop %v878
          %v880 = vmul.f32 %v851, 1.442695
          %v881 = vpow.pop %v880
          %v882 = vmul.f32 %v852, 1.442695
          %v883 = vpow.pop %v882
          %v884 = vmul.f32 %v853, 1.442695
          %v885 = vpow.pop %v884
          %886 = vadd.xlane.f32.xlu0 %v855
          %v887 = vpop.xlane.xlu0 %886
          %888 = vadd.xlane.f32.xlu0 %v857
          %v889 = vpop.xlane.xlu0 %888
          %890 = vadd.xlane.f32.xlu0 %v859
          %v891 = vpop.xlane.xlu0 %890
          %892 = vadd.xlane.f32.xlu0 %v861
          %v893 = vpop.xlane.xlu0 %892
          %894 = vadd.xlane.f32.xlu0 %v863
          %v895 = vpop.xlane.xlu0 %894
          %896 = vadd.xlane.f32.xlu0 %v865
          %v897 = vpop.xlane.xlu0 %896
          %898 = vadd.xlane.f32.xlu0 %v867
          %v899 = vpop.xlane.xlu0 %898
          %900 = vadd.xlane.f32.xlu0 %v869
          %v901 = vpop.xlane.xlu0 %900
          %902 = vadd.xlane.f32.xlu0 %v871
          %v903 = vpop.xlane.xlu0 %902
          %904 = vadd.xlane.f32.xlu0 %v873
          %v905 = vpop.xlane.xlu0 %904
          %906 = vadd.xlane.f32.xlu0 %v875
          %v907 = vpop.xlane.xlu0 %906
          %908 = vadd.xlane.f32.xlu0 %v877
          %v909 = vpop.xlane.xlu0 %908
          %910 = vadd.xlane.f32.xlu0 %v879
          %v911 = vpop.xlane.xlu0 %910
          %912 = vadd.xlane.f32.xlu0 %v881
          %v913 = vpop.xlane.xlu0 %912
          %914 = vadd.xlane.f32.xlu0 %v883
          %v915 = vpop.xlane.xlu0 %914
          %916 = vadd.xlane.f32.xlu0 %v885
          %v917 = vpop.xlane.xlu0 %916
          %v918 = vlog2.pop %v887
          %v919 = vmul.f32 %v918, 0.6931472
          %v920 = vlog2.pop %v889
          %v921 = vmul.f32 %v920, 0.6931472
          %v922 = vlog2.pop %v891
          %v923 = vmul.f32 %v922, 0.6931472
          %v924 = vlog2.pop %v893
          %v925 = vmul.f32 %v924, 0.6931472
          %v926 = vlog2.pop %v895
          %v927 = vmul.f32 %v926, 0.6931472
          %v928 = vlog2.pop %v897
          %v929 = vmul.f32 %v928, 0.6931472
          %v930 = vlog2.pop %v899
          %v931 = vmul.f32 %v930, 0.6931472
          %v932 = vlog2.pop %v901
          %v933 = vmul.f32 %v932, 0.6931472
          %v934 = vlog2.pop %v903
          %v935 = vmul.f32 %v934, 0.6931472
          %v936 = vlog2.pop %v905
          %v937 = vmul.f32 %v936, 0.6931472
          %v938 = vlog2.pop %v907
          %v939 = vmul.f32 %v938, 0.6931472
          %v940 = vlog2.pop %v909
          %v941 = vmul.f32 %v940, 0.6931472
          %v942 = vlog2.pop %v911
          %v943 = vmul.f32 %v942, 0.6931472
          %v944 = vlog2.pop %v913
          %v945 = vmul.f32 %v944, 0.6931472
          %v946 = vlog2.pop %v915
          %v947 = vmul.f32 %v946, 0.6931472
          %v948 = vlog2.pop %v917
          %v949 = vmul.f32 %v948, 0.6931472
          %v950 = vadd.f32 %v919, %v807
          %v951 = vadd.f32 %v921, %v809
          %v952 = vadd.f32 %v923, %v811
          %v953 = vadd.f32 %v925, %v813
          %v954 = vadd.f32 %v927, %v815
          %v955 = vadd.f32 %v929, %v817
          %v956 = vadd.f32 %v931, %v819
          %v957 = vadd.f32 %v933, %v821
          %v958 = vadd.f32 %v935, %v823
          %v959 = vadd.f32 %v937, %v825
          %v960 = vadd.f32 %v939, %v827
          %v961 = vadd.f32 %v941, %v829
          %v962 = vadd.f32 %v943, %v831
          %v963 = vadd.f32 %v945, %v833
          %v964 = vadd.f32 %v947, %v835
          %v965 = vadd.f32 %v949, %v837
          %v966 = vsub.f32 %v790, %v950
          %v967 = vsub.f32 %v791, %v951
          %v968 = vsub.f32 %v792, %v952
          %v969 = vsub.f32 %v793, %v953
          %v970 = vsub.f32 %v794, %v954
          %v971 = vsub.f32 %v795, %v955
          %v972 = vsub.f32 %v796, %v956
          %v973 = vsub.f32 %v797, %v957
          %v974 = vsub.f32 %v798, %v958
          %v975 = vsub.f32 %v799, %v959
          %v976 = vsub.f32 %v800, %v960
          %v977 = vsub.f32 %v801, %v961
          %v978 = vsub.f32 %v802, %v962
          %v979 = vsub.f32 %v803, %v963
          %v980 = vsub.f32 %v804, %v964
          %v981 = vsub.f32 %v805, %v965
          %982 = vst [vmem:[%s376] sm:$0xff] %v966
          %983 = vst [vmem:[%s376 + $0x8] sm:$0xff] %v967
          %984 = vst [vmem:[%s376 + $0x10] sm:$0xff] %v968
          %985 = vst [vmem:[%s376 + $0x18] sm:$0xff] %v969
          %986 = vst [vmem:[%s376 + $0x20] sm:$0xff] %v970
          %987 = vst [vmem:[%s376 + $0x28] sm:$0xff] %v971
          %988 = vst [vmem:[%s376 + $0x30] sm:$0xff] %v972
          %989 = vst [vmem:[%s376 + $0x38] sm:$0xff] %v973
          %990 = vst [vmem:[%s376 + $0x40] sm:$0xff] %v974
          %991 = vst [vmem:[%s376 + $0x48] sm:$0xff] %v975
          %992 = vst [vmem:[%s376 + $0x50] sm:$0xff] %v976
          %993 = vst [vmem:[%s376 + $0x58] sm:$0xff] %v977
          %994 = vst [vmem:[%s376 + $0x60] sm:$0xff] %v978
          %995 = vst [vmem:[%s376 + $0x68] sm:$0xff] %v979
          %996 = vst [vmem:[%s376 + $0x70] sm:$0xff] %v980
          %997 = vst [vmem:[%s376 + $0x78] sm:$0xff] %v981
        $region82: #{graphsage_forward.7} parent=69 // pred_fallthru
          _
        %s998 = smul.u32 16, %s19
        %p999 = scmp.lt.s32.totalorder %s998, 31
        %s1000 = scalar_select %p999, %s998, 31
        %s1001 = smul.addr %s1000, 8
        %s1002 = scalar_lea.vmem %s4, %s1001
        // Predicated region
        $region83: #{graphsage_forward.7} parent=69 // pred_check
          %p1003 = pneg %p151
        $region84: #{graphsage_forward.7} parent=69 // pred_check_branch
          %1005 = sbr.rel (%p1003) target = $region86
        $region85: #{graphsage_forward.7} parent=69 // pred_region
          %s1006 = smul.u32 16, %s19
        $region86: #{graphsage_forward.7} parent=69 // pred_fallthru
          _
      $region70: #{graphsage_forward.7} parent=5 // pred_fallthru
        _
      %p1007 = scmp.le.s32.totalorder 2, %s10
      // Predicated region
      $region87: #{graphsage_forward.7} parent=5 // pred_check
        %p1008 = pneg %p1007
      $region88: #{graphsage_forward.7} parent=5 // pred_check_branch
        %1010 = sbr.rel (%p1008) target = $region90
      $region89: #{graphsage_forward.7} parent=5 // pred_region
        %s1011 = ssub.s32 %s10, 2
        // Predicated region
        $region91: #{graphsage_forward.7} parent=89 // pred_check
          %p1012 = pneg %p157
        $region92: #{graphsage_forward.7} parent=89 // pred_check_branch
          %1014 = sbr.rel (%p1012) target = $region94
        $region93: #{graphsage_forward.7} parent=89 // pred_region
          %s1015 = smul.u32 16, %s21
          %p1016 = scmp.lt.s32.totalorder %s1015, 31
          %s1017 = scalar_select %p1016, %s1015, 31
          %s1018 = smul.addr %s1017, 8
          %s1019 = scalar_lea.vmem %s4, %s1018
        $region94: #{graphsage_forward.7} parent=89 // pred_fallthru
          _
      $region90: #{graphsage_forward.7} parent=5 // pred_fallthru
        _
    $region6: #{graphsage_forward.7} parent=1 // loop_footer
      %s14 = sadd.s32 1, %s10
    $region7: #{graphsage_forward.7} parent=1 // loop_footer_branch
      %9 = sbr.rel target = $region3
    $region8: #{graphsage_forward.7} parent=1 // loop_exit
      _

</llo_original>
